<compile_context>
chip_gen: v7x
topology: tpu7x:2x2x1
jax: 0.10.0
libtpu: 0.0.40
codegen_flags: <defaults>
</compile_context>

<pallas_src>
import jax
import jax.numpy as jnp
from jax.experimental import pallas as pl
from jax.experimental.pallas import tpu as pltpu


# ---------------------------------------------------------------------------
# Pallas kernel: fused conv(im2col matmul) + bias + ReLU + f32 GAP + fc head
# ---------------------------------------------------------------------------
def _encoder_fc_kernel(patches_ref, wconv_ref, bconv_ref, wfc_ref, bfc_ref,
                       o_ref):
    """One grid step == nb images.

    patches_ref : (nb*HW, 9*C_in)  bf16  im2col patch rows
    wconv_ref   : (9*C_in, C_mid)  bf16  conv weight, rows ordered (ky,kx,Cin)
    bconv_ref   : (1, C_mid)       f32
    wfc_ref     : (C_mid, NCp)     bf16  fc weight padded to 128 output lanes
    bfc_ref     : (1, NCp)         f32
    o_ref       : (nb, NCp)        f32   logits for this block of images
    """
    nb = o_ref.shape[0]
    hw = patches_ref.shape[0] // nb

    # Convolution as a single (nb*HW, 9*C_in) @ (9*C_in, C_mid) MXU matmul.
    conv = jnp.dot(patches_ref[...], wconv_ref[...],
                   preferred_element_type=jnp.float32)       # (nb*HW, C_mid)
    # Bias + ReLU in f32 on the VPU.
    conv = jnp.maximum(conv + bconv_ref[...], 0.0)
    # Global average pool: free-view reshape (HW is a multiple of the sublane
    # tile) + f32 cross-sublane sum on the XLU (idle slot), scaled by 1/HW.
    pooled = jnp.sum(conv.reshape(nb, hw, conv.shape[-1]), axis=1) * (1.0 / hw)
    # fc head, lane-dense (NCp multiple of 128) output.
    logits = jnp.dot(pooled.astype(jnp.bfloat16), wfc_ref[...],
                     preferred_element_type=jnp.float32)     # (nb, NCp)
    o_ref[...] = (logits + bfc_ref[...]).astype(o_ref.dtype)


# ---------------------------------------------------------------------------
# Per-generation VMEM planning
# ---------------------------------------------------------------------------
def _vmem_plan():
    """Returns (per_step_live_budget_bytes, vmem_limit_bytes, prefer_even_grid).

    v7x has only 64 MiB physical VMEM (32 MiB scoped default) and 2 TCs, so
    keep the live working set small and the grid even; v5e/v6e have 128 MiB
    and a single TC, so prefer fewer, fatter grid steps."""
    cap = 128 * 1024 * 1024
    try:
        cap = getattr(pltpu.get_tpu_info(), "vmem_capacity_bytes", cap) or cap
    except Exception:
        pass
    if cap <= 64 * 1024 * 1024:                       # v7x-class
        return 20 * 1024 * 1024, 30 * 1024 * 1024, True
    return 56 * 1024 * 1024, 80 * 1024 * 1024, False  # v5e / v6e


def _choose_block_batch(n_imgs, hw, c9, c_mid, budget_bytes, prefer_even_grid):
    """Images per grid step, sized against the real per-step VMEM footprint:
      - bf16 patch tile, lane-padded c9 -> 128, x2 pipeline buffers
      - f32 conv intermediate (nb*hw rows x lane-padded c_mid)
    Returns (nb, n_padded).  When the grid is split (>1 step), nb is a
    multiple of 8 so the (nb, NCp) output block satisfies the (8, 128)
    tiling constraint; the batch is zero-padded up to nb * n_steps."""
    cdiv = lambda a, b: -(-a // b)
    lanes_patch = cdiv(c9, 128) * 128
    lanes_mid = cdiv(c_mid, 128) * 128
    bytes_per_img = hw * (2 * lanes_patch * 2 + lanes_mid * 4)
    max_nb = max(1, budget_bytes // bytes_per_img)

    # Single fat step when everything fits (and we don't need 2 cores busy).
    if n_imgs <= max_nb and not (prefer_even_grid and n_imgs >= 16):
        return n_imgs, n_imgs

    nb = max(8, (min(max_nb, n_imgs) // 8) * 8)
    n_steps = cdiv(n_imgs, nb)
    if prefer_even_grid and n_steps % 2:
        n_steps += 1                                   # keep both v7x TCs busy
    nb = max(8, cdiv(cdiv(n_imgs, n_steps), 8) * 8)
    n_steps = cdiv(n_imgs, nb)
    if prefer_even_grid and n_steps % 2:
        n_steps += 1
    return nb, nb * n_steps


# ---------------------------------------------------------------------------
# ResNet.forward equivalent (backbone + fc) built on the Pallas kernel
# ---------------------------------------------------------------------------
def resnet_forward(params, x_nchw):
    """Equivalent of ResNet.forward: backbone(x) then fc(x).  x is NCHW."""
    wconv, bconv, wfc, bfc = (params["wconv"], params["bconv"],
                              params["wfc"], params["bfc"])
    N, C_in, H, W = x_nchw.shape
    assert wconv.shape[:3] == (3, 3, C_in), "wconv must be HWIO (3,3,C_in,C_mid)"
    C_mid = wconv.shape[3]
    NC = wfc.shape[1]
    NCp = pl.cdiv(NC, 128) * 128            # lane-dense output width
    HW = H * W
    C9 = 9 * C_in
    # Free-view reshape in the kernel and bf16 sublane tiling both want this.
    assert HW % 16 == 0, "H*W must be a multiple of 16 for this kernel"

    # ---- wrapper-side glue: NCHW -> NHWC (bf16!), zero-pad, im2col ----
    # Cast to bf16 BEFORE the 9-slice concat so the largest wrapper array
    # (the 9x-expanded patch rows) is written/read from HBM at half width.
    x = jnp.transpose(x_nchw, (0, 2, 3, 1)).astype(jnp.bfloat16)
    xp = jnp.pad(x, ((0, 0), (1, 1), (1, 1), (0, 0)))
    # ordering (ky, kx, C_in) matches wconv.reshape(9*C_in, C_mid)
    patches = jnp.concatenate(
        [xp[:, ky:ky + H, kx:kx + W, :] for ky in range(3) for kx in range(3)],
        axis=-1).reshape(N * HW, C9)                      # bf16 (N*HW, 9*C_in)

    budget, vmem_limit, prefer_even = _vmem_plan()
    nb, Np = _choose_block_batch(N, HW, C9, C_mid, budget, prefer_even)
    if Np != N:
        patches = jnp.pad(patches, ((0, (Np - N) * HW), (0, 0)))
    grid = Np // nb

    wconv_flat = wconv.reshape(C9, C_mid).astype(jnp.bfloat16)
    bconv_2d = bconv.reshape(1, C_mid).astype(jnp.float32)
    wfc_p = jnp.pad(wfc, ((0, 0), (0, NCp - NC))).astype(jnp.bfloat16)
    bfc_p = jnp.pad(bfc, (0, NCp - NC)).reshape(1, NCp).astype(jnp.float32)

    out = pl.pallas_call(
        _encoder_fc_kernel,
        out_shape=jax.ShapeDtypeStruct((Np, NCp), jnp.float32),
        grid_spec=pltpu.PrefetchScalarGridSpec(
            num_scalar_prefetch=0,
            grid=(grid,),
            in_specs=[
                pl.BlockSpec((nb * HW, C9), lambda g: (g, 0)),
                pl.BlockSpec((C9, C_mid), lambda g: (0, 0)),
                pl.BlockSpec((1, C_mid), lambda g: (0, 0)),
                pl.BlockSpec((C_mid, NCp), lambda g: (0, 0)),
                pl.BlockSpec((1, NCp), lambda g: (0, 0)),
            ],
            out_specs=pl.BlockSpec((nb, NCp), lambda g: (g, 0)),
        ),
        compiler_params=pltpu.CompilerParams(
            dimension_semantics=("parallel",),
            vmem_limit_bytes=vmem_limit),
    )(patches, wconv_flat, bconv_2d, wfc_p, bfc_p)

    return out[:N, :NC]


# ---------------------------------------------------------------------------
# FixMatch forward (mirrors the PyTorch control flow)
# ---------------------------------------------------------------------------
def fixmatch_forward(main_params, im_x, im_u_w=None, im_u_s=None,
                     im_u_s2=None, eman=False, ema_params=None):
    if im_u_w is None and im_u_s is None:
        return resnet_forward(main_params, im_x)

    bsx = im_x.shape[0]
    if im_u_s2 is not None:
        if not eman:
            inputs = jnp.concatenate((im_x, im_u_w, im_u_s, im_u_s2), axis=0)
            logits = resnet_forward(main_params, inputs)
            logits_x = logits[:bsx]
            rest = logits[bsx:]
            n = rest.shape[0] // 3
            logits_u_w, logits_u_s, logits_u_s2 = (rest[:n], rest[n:2 * n],
                                                   rest[2 * n:])
        else:
            inputs = jnp.concatenate((im_x, im_u_s, im_u_s2), axis=0)
            logits = resnet_forward(main_params, inputs)
            logits_x = logits[:bsx]
            rest = logits[bsx:]
            n = rest.shape[0] // 2
            logits_u_s, logits_u_s2 = rest[:n], rest[n:]
            logits_u_w = resnet_forward(ema_params, im_u_w)
        return logits_x, logits_u_w, logits_u_s, logits_u_s2
    else:
        if not eman:
            inputs = jnp.concatenate((im_x, im_u_w, im_u_s), axis=0)
            logits = resnet_forward(main_params, inputs)
            logits_x = logits[:bsx]
            rest = logits[bsx:]
            n = rest.shape[0] // 2
            logits_u_w, logits_u_s = rest[:n], rest[n:]
        else:
            inputs = jnp.concatenate((im_x, im_u_s), axis=0)
            logits = resnet_forward(main_params, inputs)
            logits_x = logits[:bsx]
            logits_u_s = logits[bsx:]
            logits_u_w = resnet_forward(ema_params, im_u_w)
        return logits_x, logits_u_w, logits_u_s


# ---------------------------------------------------------------------------
# Pure-JAX reference (for correctness check of the Pallas kernel)
# ---------------------------------------------------------------------------
def resnet_forward_ref(params, x_nchw):
    x = jnp.transpose(x_nchw, (0, 2, 3, 1)).astype(jnp.float32)  # NHWC
    out = jax.lax.conv_general_dilated(
        x, params["wconv"], window_strides=(1, 1), padding="SAME",
        dimension_numbers=("NHWC", "HWIO", "NHWC"))
    out = jnp.maximum(out + params["bconv"], 0.0)
    pooled = jnp.mean(out, axis=(1, 2))
    return pooled @ params["wfc"] + params["bfc"]


# ---------------------------------------------------------------------------
if __name__ == "__main__":
    key = jax.random.PRNGKey(0)
    B, C_IN, HWS = 2, 4, 16
    C_MID, NUM_CLASSES = 32, 10  # backbone.out_channels = 32

    k = jax.random.split(key, 8)
    main_params = {
        "wconv": jax.random.normal(k[0], (3, 3, C_IN, C_MID), jnp.float32) * 0.1,
        "bconv": jax.random.normal(k[1], (C_MID,), jnp.float32) * 0.01,
        "wfc":   jax.random.normal(k[2], (C_MID, NUM_CLASSES), jnp.float32) * 0.1,
        "bfc":   jax.random.normal(k[3], (NUM_CLASSES,), jnp.float32) * 0.01,
    }
    # TODO(synk): momentum_update_ema is a training-time parameter update, not
    # part of the forward hot path; EMA params are just a copy here.
    ema_params = jax.tree_util.tree_map(lambda p: p, main_params)

    im_x   = jax.random.normal(k[4], (B, C_IN, HWS, HWS), jnp.float32)
    im_u_w = jax.random.normal(k[5], (B, C_IN, HWS, HWS), jnp.float32)
    im_u_s = jax.random.normal(k[6], (B, C_IN, HWS, HWS), jnp.float32)

    # FixMatch forward (eman=False, 3-input branch).
    logits_x, logits_u_w, logits_u_s = fixmatch_forward(
        main_params, im_x, im_u_w, im_u_s, eman=False)
    jax.block_until_ready((logits_x, logits_u_w, logits_u_s))

    # Correctness check against pure-JAX f32 reference (kernel uses bf16
    # matmul operands with f32 accumulation -> loosened tolerance).
    inputs = jnp.concatenate((im_x, im_u_w, im_u_s), axis=0)
    ref = resnet_forward_ref(main_params, inputs)
    got = jnp.concatenate((logits_x, logits_u_w, logits_u_s), axis=0)
    assert got.shape == (3 * B, NUM_CLASSES)
    assert jnp.allclose(got, ref, atol=2e-2, rtol=2e-2), "mismatch vs reference"

    print("KERNEL_OK")
</pallas_src>

<mosaic_0001>
module attributes {stable_mosaic.version = 11 : i64} {
  func.func @_encoder_fc_kernel(%arg0: i32, %arg1: memref<1536x36xbf16, #tpu.memory_space<vmem>>, %arg2: memref<36x32xbf16, #tpu.memory_space<vmem>>, %arg3: memref<1x32xf32, #tpu.memory_space<vmem>>, %arg4: memref<32x128xbf16, #tpu.memory_space<vmem>>, %arg5: memref<1x128xf32, #tpu.memory_space<vmem>>, %arg6: memref<6x128xf32, #tpu.memory_space<vmem>>) attributes {dimension_semantics = [#tpu.dimension_semantics<parallel>], iteration_bounds = array<i64: 1>, scalar_prefetch = 0 : i64, scratch_operands = 0 : i64, tpu.core_type = #tpu.core_type<tc>, window_params = [{transform_indices = @transform_0, window_bounds = array<i64: 1536, 36>}, {pipeline_mode = #tpu.pipeline_mode<synchronous>, transform_indices = @transform_1, window_bounds = array<i64: 36, 32>}, {pipeline_mode = #tpu.pipeline_mode<synchronous>, transform_indices = @transform_2, window_bounds = array<i64: 1, 32>}, {pipeline_mode = #tpu.pipeline_mode<synchronous>, transform_indices = @transform_3, window_bounds = array<i64: 32, 128>}, {pipeline_mode = #tpu.pipeline_mode<synchronous>, transform_indices = @transform_4, window_bounds = array<i64: 1, 128>}, {transform_indices = @transform_5, window_bounds = array<i64: 6, 128>}]} {
    %c0 = arith.constant 0 : index
    %c0_0 = arith.constant 0 : index
    %0 = vector.load %arg1[%c0, %c0_0] : memref<1536x36xbf16, #tpu.memory_space<vmem>>, vector<1536x36xbf16>
    %c0_1 = arith.constant 0 : index
    %c0_2 = arith.constant 0 : index
    %1 = vector.load %arg2[%c0_1, %c0_2] : memref<36x32xbf16, #tpu.memory_space<vmem>>, vector<36x32xbf16>
    %cst = arith.constant dense<0.000000e+00> : vector<1536x32xf32>
    %2 = tpu.matmul %0, %1, %cst {dimension_numbers = #tpu.dot_dimension_numbers<[1], [0], [0], [1], [0, 0, 1, 1], [], []>} : vector<1536x36xbf16>, vector<36x32xbf16>, vector<1536x32xf32> -> vector<1536x32xf32>
    %c0_3 = arith.constant 0 : index
    %c0_4 = arith.constant 0 : index
    %3 = vector.load %arg3[%c0_3, %c0_4] : memref<1x32xf32, #tpu.memory_space<vmem>>, vector<1x32xf32>
    %4 = vector.broadcast %3 : vector<1x32xf32> to vector<1536x32xf32>
    %5 = arith.addf %2, %4 : vector<1536x32xf32>
    %cst_5 = arith.constant 0.000000e+00 : f32
    %6 = vector.broadcast %cst_5 : f32 to vector<1536x32xf32>
    %7 = arith.maximumf %5, %6 : vector<1536x32xf32>
    %8 = vector.shape_cast %7 : vector<1536x32xf32> to vector<6x256x32xf32>
    %cst_6 = arith.constant dense<0.000000e+00> : vector<6x32xf32>
    %9 = vector.multi_reduction <add>, %8, %cst_6 [1] : vector<6x256x32xf32> to vector<6x32xf32>
    %cst_7 = arith.constant 3.906250e-03 : f32
    %10 = vector.broadcast %cst_7 : f32 to vector<6x32xf32>
    %11 = arith.mulf %9, %10 : vector<6x32xf32>
    %12 = arith.truncf %11 : vector<6x32xf32> to vector<6x32xbf16>
    %c0_8 = arith.constant 0 : index
    %c0_9 = arith.constant 0 : index
    %13 = vector.load %arg4[%c0_8, %c0_9] : memref<32x128xbf16, #tpu.memory_space<vmem>>, vector<32x128xbf16>
    %cst_10 = arith.constant dense<0.000000e+00> : vector<6x128xf32>
    %14 = tpu.matmul %12, %13, %cst_10 {dimension_numbers = #tpu.dot_dimension_numbers<[1], [0], [0], [1], [0, 0, 1, 1], [], []>} : vector<6x32xbf16>, vector<32x128xbf16>, vector<6x128xf32> -> vector<6x128xf32>
    %c0_11 = arith.constant 0 : index
    %c0_12 = arith.constant 0 : index
    %15 = vector.load %arg5[%c0_11, %c0_12] : memref<1x128xf32, #tpu.memory_space<vmem>>, vector<1x128xf32>
    %16 = vector.broadcast %15 : vector<1x128xf32> to vector<6x128xf32>
    %17 = arith.addf %14, %16 : vector<6x128xf32>
    %c0_13 = arith.constant 0 : index
    %c0_14 = arith.constant 0 : index
    %18 = vector.load %arg6[%c0_13, %c0_14] : memref<6x128xf32, #tpu.memory_space<vmem>>, vector<6x128xf32>
    tpu.vector_store %arg6[%c0_13, %c0_14], %17 {strides = array<i32>} : memref<6x128xf32, #tpu.memory_space<vmem>>, vector<6x128xf32>,
    return
  }
  func.func @transform_0(%arg0: i32) -> (i32, i32) {
    %c0_i32 = arith.constant 0 : i32
    %c0_i32_0 = arith.constant 0 : i32
    return %arg0, %c0_i32 : i32, i32
  }
  func.func @transform_1(%arg0: i32) -> (i32, i32) {
    %c0_i32 = arith.constant 0 : i32
    %c0_i32_0 = arith.constant 0 : i32
    %c0_i32_1 = arith.constant 0 : i32
    return %c0_i32, %c0_i32_0 : i32, i32
  }
  func.func @transform_2(%arg0: i32) -> (i32, i32) {
    %c0_i32 = arith.constant 0 : i32
    %c0_i32_0 = arith.constant 0 : i32
    %c0_i32_1 = arith.constant 0 : i32
    return %c0_i32, %c0_i32_0 : i32, i32
  }
  func.func @transform_3(%arg0: i32) -> (i32, i32) {
    %c0_i32 = arith.constant 0 : i32
    %c0_i32_0 = arith.constant 0 : i32
    %c0_i32_1 = arith.constant 0 : i32
    return %c0_i32, %c0_i32_0 : i32, i32
  }
  func.func @transform_4(%arg0: i32) -> (i32, i32) {
    %c0_i32 = arith.constant 0 : i32
    %c0_i32_0 = arith.constant 0 : i32
    %c0_i32_1 = arith.constant 0 : i32
    return %c0_i32, %c0_i32_0 : i32, i32
  }
  func.func @transform_5(%arg0: i32) -> (i32, i32) {
    %c0_i32 = arith.constant 0 : i32
    %c0_i32_0 = arith.constant 0 : i32
    return %arg0, %c0_i32 : i32, i32
  }
}

</mosaic_0001>

<llo_original>
// kernel: tpu_custom_call.1
$region0: #{tpu_custom_call.1}
  #allocation0 [shape = 'u32[]', space=smem, size = 0x4, offset = 0x4, fixed_abs, tag = 'smem constant byte address 0x4 - core index']
  #allocation1 [shape = 'u32[144,128]{1,0:T(1,128)}', space=vmem, size = 0x12000, scoped, tag = 'internal scratch']
  %s0 = inlined_call_operand.hbm [shape: bf16[1536,36], index: 0, kind: input, shape index: {}]
  %s1 = inlined_call_operand.hbm [shape: bf16[36,32], index: 1, kind: input, shape index: {}]
  %s2 = inlined_call_operand.hbm [shape: f32[1,32], index: 2, kind: input, shape index: {}]
  %s3 = inlined_call_operand.hbm [shape: bf16[32,128], index: 3, kind: input, shape index: {}]
  %s4 = inlined_call_operand.hbm [shape: f32[1,128], index: 4, kind: input, shape index: {}]
  %s5 = inlined_call_operand.hbm [shape: f32[6,128], index: 5, kind: output, shape index: {}]
  %s6 = sld [smem:[#allocation0]]
  $region50: #{tpu_custom_call.1} parent=0
    _
  %s8 = ssub.s32 1, %s6
  %s9 = scalar_select 0, %s8, %s6
  $region1: #{tpu_custom_call.1} parent=0
    #allocation2 [shape = 'u8[393216]{0}', space=vmem, size = 0x60000, scoped, tag = 'input window, operand 0, single buffered']
    #allocation3 [shape = 's32[1]{0}', space=sflag, size = 0x4, scoped, tag = 'scoped memory for tpu_custom_call.1']
    #allocation4 [shape = 's32[1]{0}', space=sflag, size = 0x4, scoped, tag = 'scoped memory for tpu_custom_call.1']
    #allocation5 [shape = 'u8[10240]{0}', space=vmem, size = 0x2800, scoped, tag = 'input window, operand 1, single buffered']
    #allocation6 [shape = 's32[1]{0}', space=sflag, size = 0x4, scoped, tag = 'scoped memory for tpu_custom_call.1']
    #allocation7 [shape = 'u8[512]{0}', space=vmem, size = 0x400, scoped, tag = 'input window, operand 2, single buffered']
    #allocation8 [shape = 'u8[8192]{0}', space=vmem, size = 0x2000, scoped, tag = 'input window, operand 3, single buffered']
    #allocation9 [shape = 's32[1]{0}', space=sflag, size = 0x4, scoped, tag = 'scoped memory for tpu_custom_call.1']
    #allocation10 [shape = 'u8[512]{0}', space=vmem, size = 0x400, scoped, tag = 'input window, operand 4, single buffered']
    #allocation11 [shape = 'u8[4096]{0}', space=vmem, size = 0x1000, scoped, tag = 'output window, operand 0, single buffered']
    %10 = vsyncpa [#allocation3], 0
    %11 = vsyncpa [#allocation6], 0
    %12 = vsyncpa [#allocation9], 0
    %13 = vsyncpa [#allocation4], 0
    // Predicated region
    $region2: #{tpu_custom_call.1} parent=1 // pred_check
      _
    $region3: #{tpu_custom_call.1} parent=1 // pred_check_branch
      %15 = sbr.rel (0) target = $region5
    $region4: #{tpu_custom_call.1} parent=1 // pred_region
      %s17 = ssub.s32 12288, 12288
      %18 = vsyncadd [#allocation3], %s17
      %s19 = sshll.u32 [#allocation2], 4
      %s20 = int_to_ptr.vmem [resolvable:$true] %s19
      %25 = dma.hbm_to_vmem [thread:$0]  %s0, 12288, %s20, [#allocation3], 64, 64, 4
    $region5: #{tpu_custom_call.1} parent=1 // pred_fallthru
      _
    // Predicated region
    $region6: #{tpu_custom_call.1} parent=1 // pred_check
      _
    $region7: #{tpu_custom_call.1} parent=1 // pred_check_branch
      %27 = sbr.rel (0) target = $region9
    $region8: #{tpu_custom_call.1} parent=1 // pred_region
      %s29 = ssub.s32 320, 320
      %30 = vsyncadd [#allocation6], %s29
      %s31 = sshll.u32 [#allocation5], 4
      %s32 = int_to_ptr.vmem [resolvable:$true] %s31
      %37 = dma.hbm_to_vmem [thread:$0]  %s1, 320, %s32, [#allocation6], 64, 64, 4
    $region9: #{tpu_custom_call.1} parent=1 // pred_fallthru
      _
    // Predicated region
    $region10: #{tpu_custom_call.1} parent=1 // pred_check
      _
    $region11: #{tpu_custom_call.1} parent=1 // pred_check_branch
      %39 = sbr.rel (0) target = $region13
    $region12: #{tpu_custom_call.1} parent=1 // pred_region
      %s41 = ssub.s32 16, 16
      %42 = vsyncadd [#allocation6], %s41
      %s44 = sshll.u32 [#allocation7], 4
      %s45 = int_to_ptr.vmem [resolvable:$true] %s44
      %47 = dma.hbm_to_vmem [thread:$0]  %s2, 16, %s45, [#allocation6]
    $region13: #{tpu_custom_call.1} parent=1 // pred_fallthru
      _
    // Predicated region
    $region14: #{tpu_custom_call.1} parent=1 // pred_check
      _
    $region15: #{tpu_custom_call.1} parent=1 // pred_check_branch
      %49 = sbr.rel (0) target = $region17
    $region16: #{tpu_custom_call.1} parent=1 // pred_region
      %s51 = ssub.s32 256, 256
      %52 = vsyncadd [#allocation9], %s51
      %s53 = sshll.u32 [#allocation8], 4
      %s54 = int_to_ptr.vmem [resolvable:$true] %s53
      %59 = dma.hbm_to_vmem [thread:$0]  %s3, 256, %s54, [#allocation9], 64, 64, 4
    $region17: #{tpu_custom_call.1} parent=1 // pred_fallthru
      _
    // Predicated region
    $region18: #{tpu_custom_call.1} parent=1 // pred_check
      _
    $region19: #{tpu_custom_call.1} parent=1 // pred_check_branch
      %61 = sbr.rel (0) target = $region21
    $region20: #{tpu_custom_call.1} parent=1 // pred_region
      %s63 = ssub.s32 16, 16
      %64 = vsyncadd [#allocation9], %s63
      %s66 = sshll.u32 [#allocation10], 4
      %s67 = int_to_ptr.vmem [resolvable:$true] %s66
      %69 = dma.hbm_to_vmem [thread:$0]  %s4, 16, %s67, [#allocation9]
    $region21: #{tpu_custom_call.1} parent=1 // pred_fallthru
      _
    // Predicated region
    $region22: #{tpu_custom_call.1} parent=1 // pred_check
      _
    $region23: #{tpu_custom_call.1} parent=1 // pred_check_branch
      %71 = sbr.rel (0) target = $region25
    $region24: #{tpu_custom_call.1} parent=1 // pred_region
      %72 = dma.done [#allocation3], 12288
    $region25: #{tpu_custom_call.1} parent=1 // pred_fallthru
      _
    // Predicated region
    $region26: #{tpu_custom_call.1} parent=1 // pred_check
      _
    $region27: #{tpu_custom_call.1} parent=1 // pred_check_branch
      %74 = sbr.rel (0) target = $region29
    $region28: #{tpu_custom_call.1} parent=1 // pred_region
      %75 = dma.done [#allocation6], 320
    $region29: #{tpu_custom_call.1} parent=1 // pred_fallthru
      _
    // Predicated region
    $region30: #{tpu_custom_call.1} parent=1 // pred_check
      _
    $region31: #{tpu_custom_call.1} parent=1 // pred_check_branch
      %77 = sbr.rel (0) target = $region33
    $region32: #{tpu_custom_call.1} parent=1 // pred_region
      %78 = dma.done [#allocation6], 16
    $region33: #{tpu_custom_call.1} parent=1 // pred_fallthru
      _
    // Predicated region
    $region34: #{tpu_custom_call.1} parent=1 // pred_check
      _
    $region35: #{tpu_custom_call.1} parent=1 // pred_check_branch
      %80 = sbr.rel (0) target = $region37
    $region36: #{tpu_custom_call.1} parent=1 // pred_region
      %81 = dma.done [#allocation9], 256
    $region37: #{tpu_custom_call.1} parent=1 // pred_fallthru
      _
    // Predicated region
    $region38: #{tpu_custom_call.1} parent=1 // pred_check
      _
    $region39: #{tpu_custom_call.1} parent=1 // pred_check_branch
      %83 = sbr.rel (0) target = $region41
    $region40: #{tpu_custom_call.1} parent=1 // pred_region
      %84 = dma.done [#allocation9], 16
    $region41: #{tpu_custom_call.1} parent=1 // pred_fallthru
      _
    %v86 = vld [vmem:[#allocation2] sm:$0xf]
    %v87 = vld [vmem:[#allocation2 + $0x4] sm:$0xf]
    %v88 = vld [vmem:[#allocation2 + $0x8] sm:$0xf]
    %v89 = vld [vmem:[#allocation2 + $0xc] sm:$0xf]
    %v90 = vld [vmem:[#allocation2 + $0x10] sm:$0xf]
    %v91 = vld [vmem:[#allocation2 + $0x14] sm:$0xf]
    %v92 = vld [vmem:[#allocation2 + $0x18] sm:$0xf]
    %v93 = vld [vmem:[#allocation2 + $0x1c] sm:$0xf]
    %v94 = vld [vmem:[#allocation2 + $0x20] sm:$0xf]
    %v95 = vld [vmem:[#allocation2 + $0x24] sm:$0xf]
    %v96 = vld [vmem:[#allocation2 + $0x28] sm:$0xf]
    %v97 = vld [vmem:[#allocation2 + $0x2c] sm:$0xf]
    %v98 = vld [vmem:[#allocation2 + $0x30] sm:$0xf]
    %v99 = vld [vmem:[#allocation2 + $0x34] sm:$0xf]
    %v100 = vld [vmem:[#allocation2 + $0x38] sm:$0xf]
    %v101 = vld [vmem:[#allocation2 + $0x3c] sm:$0xf]
    %v102 = vld [vmem:[#allocation2 + $0x40] sm:$0xf]
    %v103 = vld [vmem:[#allocation2 + $0x44] sm:$0xf]
    %v104 = vld [vmem:[#allocation2 + $0x48] sm:$0xf]
    %v105 = vld [vmem:[#allocation2 + $0x4c] sm:$0xf]
    %v106 = vld [vmem:[#allocation2 + $0x50] sm:$0xf]
    %v107 = vld [vmem:[#allocation2 + $0x54] sm:$0xf]
    %v108 = vld [vmem:[#allocation2 + $0x58] sm:$0xf]
    %v109 = vld [vmem:[#allocation2 + $0x5c] sm:$0xf]
    %v110 = vld [vmem:[#allocation2 + $0x60] sm:$0xf]
    %v111 = vld [vmem:[#allocation2 + $0x64] sm:$0xf]
    %v112 = vld [vmem:[#allocation2 + $0x68] sm:$0xf]
    %v113 = vld [vmem:[#allocation2 + $0x6c] sm:$0xf]
    %v114 = vld [vmem:[#allocation2 + $0x70] sm:$0xf]
    %v115 = vld [vmem:[#allocation2 + $0x74] sm:$0xf]
    %v116 = vld [vmem:[#allocation2 + $0x78] sm:$0xf]
    %v117 = vld [vmem:[#allocation2 + $0x7c] sm:$0xf]
    %v118 = vld [vmem:[#allocation2 + $0x80] sm:$0xf]
    %v119 = vld [vmem:[#allocation2 + $0x84] sm:$0xf]
    %v120 = vld [vmem:[#allocation2 + $0x88] sm:$0xf]
    %v121 = vld [vmem:[#allocation2 + $0x8c] sm:$0xf]
    %v122 = vld [vmem:[#allocation2 + $0x90] sm:$0xf]
    %v123 = vld [vmem:[#allocation2 + $0x94] sm:$0xf]
    %v124 = vld [vmem:[#allocation2 + $0x98] sm:$0xf]
    %v125 = vld [vmem:[#allocation2 + $0x9c] sm:$0xf]
    %v126 = vld [vmem:[#allocation2 + $0xa0] sm:$0xf]
    %v127 = vld [vmem:[#allocation2 + $0xa4] sm:$0xf]
    %v128 = vld [vmem:[#allocation2 + $0xa8] sm:$0xf]
    %v129 = vld [vmem:[#allocation2 + $0xac] sm:$0xf]
    %v130 = vld [vmem:[#allocation2 + $0xb0] sm:$0xf]
    %v131 = vld [vmem:[#allocation2 + $0xb4] sm:$0xf]
    %v132 = vld [vmem:[#allocation2 + $0xb8] sm:$0xf]
    %v133 = vld [vmem:[#allocation2 + $0xbc] sm:$0xf]
    %v134 = vld [vmem:[#allocation2 + $0xc0] sm:$0xf]
    %v135 = vld [vmem:[#allocation2 + $0xc4] sm:$0xf]
    %v136 = vld [vmem:[#allocation2 + $0xc8] sm:$0xf]
    %v137 = vld [vmem:[#allocation2 + $0xcc] sm:$0xf]
    %v138 = vld [vmem:[#allocation2 + $0xd0] sm:$0xf]
    %v139 = vld [vmem:[#allocation2 + $0xd4] sm:$0xf]
    %v140 = vld [vmem:[#allocation2 + $0xd8] sm:$0xf]
    %v141 = vld [vmem:[#allocation2 + $0xdc] sm:$0xf]
    %v142 = vld [vmem:[#allocation2 + $0xe0] sm:$0xf]
    %v143 = vld [vmem:[#allocation2 + $0xe4] sm:$0xf]
    %v144 = vld [vmem:[#allocation2 + $0xe8] sm:$0xf]
    %v145 = vld [vmem:[#allocation2 + $0xec] sm:$0xf]
    %v146 = vld [vmem:[#allocation2 + $0xf0] sm:$0xf]
    %v147 = vld [vmem:[#allocation2 + $0xf4] sm:$0xf]
    %v148 = vld [vmem:[#allocation2 + $0xf8] sm:$0xf]
    %v149 = vld [vmem:[#allocation2 + $0xfc] sm:$0xf]
    %v150 = vld [vmem:[#allocation2 + $0x100] sm:$0xf]
    %v151 = vld [vmem:[#allocation2 + $0x104] sm:$0xf]
    %v152 = vld [vmem:[#allocation2 + $0x108] sm:$0xf]
    %v153 = vld [vmem:[#allocation2 + $0x10c] sm:$0xf]
    %v154 = vld [vmem:[#allocation2 + $0x110] sm:$0xf]
    %v155 = vld [vmem:[#allocation2 + $0x114] sm:$0xf]
    %v156 = vld [vmem:[#allocation2 + $0x118] sm:$0xf]
    %v157 = vld [vmem:[#allocation2 + $0x11c] sm:$0xf]
    %v158 = vld [vmem:[#allocation2 + $0x120] sm:$0xf]
    %v159 = vld [vmem:[#allocation2 + $0x124] sm:$0xf]
    %v160 = vld [vmem:[#allocation2 + $0x128] sm:$0xf]
    %v161 = vld [vmem:[#allocation2 + $0x12c] sm:$0xf]
    %v162 = vld [vmem:[#allocation2 + $0x130] sm:$0xf]
    %v163 = vld [vmem:[#allocation2 + $0x134] sm:$0xf]
    %v164 = vld [vmem:[#allocation2 + $0x138] sm:$0xf]
    %v165 = vld [vmem:[#allocation2 + $0x13c] sm:$0xf]
    %v166 = vld [vmem:[#allocation2 + $0x140] sm:$0xf]
    %v167 = vld [vmem:[#allocation2 + $0x144] sm:$0xf]
    %v168 = vld [vmem:[#allocation2 + $0x148] sm:$0xf]
    %v169 = vld [vmem:[#allocation2 + $0x14c] sm:$0xf]
    %v170 = vld [vmem:[#allocation2 + $0x150] sm:$0xf]
    %v171 = vld [vmem:[#allocation2 + $0x154] sm:$0xf]
    %v172 = vld [vmem:[#allocation2 + $0x158] sm:$0xf]
    %v173 = vld [vmem:[#allocation2 + $0x15c] sm:$0xf]
    %v174 = vld [vmem:[#allocation2 + $0x160] sm:$0xf]
    %v175 = vld [vmem:[#allocation2 + $0x164] sm:$0xf]
    %v176 = vld [vmem:[#allocation2 + $0x168] sm:$0xf]
    %v177 = vld [vmem:[#allocation2 + $0x16c] sm:$0xf]
    %v178 = vld [vmem:[#allocation2 + $0x170] sm:$0xf]
    %v179 = vld [vmem:[#allocation2 + $0x174] sm:$0xf]
    %v180 = vld [vmem:[#allocation2 + $0x178] sm:$0xf]
    %v181 = vld [vmem:[#allocation2 + $0x17c] sm:$0xf]
    %v182 = vld [vmem:[#allocation2 + $0x180] sm:$0xf]
    %v183 = vld [vmem:[#allocation2 + $0x184] sm:$0xf]
    %v184 = vld [vmem:[#allocation2 + $0x188] sm:$0xf]
    %v185 = vld [vmem:[#allocation2 + $0x18c] sm:$0xf]
    %v186 = vld [vmem:[#allocation2 + $0x190] sm:$0xf]
    %v187 = vld [vmem:[#allocation2 + $0x194] sm:$0xf]
    %v188 = vld [vmem:[#allocation2 + $0x198] sm:$0xf]
    %v189 = vld [vmem:[#allocation2 + $0x19c] sm:$0xf]
    %v190 = vld [vmem:[#allocation2 + $0x1a0] sm:$0xf]
    %v191 = vld [vmem:[#allocation2 + $0x1a4] sm:$0xf]
    %v192 = vld [vmem:[#allocation2 + $0x1a8] sm:$0xf]
    %v193 = vld [vmem:[#allocation2 + $0x1ac] sm:$0xf]
    %v194 = vld [vmem:[#allocation2 + $0x1b0] sm:$0xf]
    %v195 = vld [vmem:[#allocation2 + $0x1b4] sm:$0xf]
    %v196 = vld [vmem:[#allocation2 + $0x1b8] sm:$0xf]
    %v197 = vld [vmem:[#allocation2 + $0x1bc] sm:$0xf]
    %v198 = vld [vmem:[#allocation2 + $0x1c0] sm:$0xf]
    %v199 = vld [vmem:[#allocation2 + $0x1c4] sm:$0xf]
    %v200 = vld [vmem:[#allocation2 + $0x1c8] sm:$0xf]
    %v201 = vld [vmem:[#allocation2 + $0x1cc] sm:$0xf]
    %v202 = vld [vmem:[#allocation2 + $0x1d0] sm:$0xf]
    %v203 = vld [vmem:[#allocation2 + $0x1d4] sm:$0xf]
    %v204 = vld [vmem:[#allocation2 + $0x1d8] sm:$0xf]
    %v205 = vld [vmem:[#allocation2 + $0x1dc] sm:$0xf]
    %v206 = vld [vmem:[#allocation2 + $0x1e0] sm:$0xf]
    %v207 = vld [vmem:[#allocation2 + $0x1e4] sm:$0xf]
    %v208 = vld [vmem:[#allocation2 + $0x1e8] sm:$0xf]
    %v209 = vld [vmem:[#allocation2 + $0x1ec] sm:$0xf]
    %v210 = vld [vmem:[#allocation2 + $0x1f0] sm:$0xf]
    %v211 = vld [vmem:[#allocation2 + $0x1f4] sm:$0xf]
    %v212 = vld [vmem:[#allocation2 + $0x1f8] sm:$0xf]
    %v213 = vld [vmem:[#allocation2 + $0x1fc] sm:$0xf]
    %v214 = vld [vmem:[#allocation2 + $0x200] sm:$0xf]
    %v215 = vld [vmem:[#allocation2 + $0x204] sm:$0xf]
    %v216 = vld [vmem:[#allocation2 + $0x208] sm:$0xf]
    %v217 = vld [vmem:[#allocation2 + $0x20c] sm:$0xf]
    %v218 = vld [vmem:[#allocation2 + $0x210] sm:$0xf]
    %v219 = vld [vmem:[#allocation2 + $0x214] sm:$0xf]
    %v220 = vld [vmem:[#allocation2 + $0x218] sm:$0xf]
    %v221 = vld [vmem:[#allocation2 + $0x21c] sm:$0xf]
    %v222 = vld [vmem:[#allocation2 + $0x220] sm:$0xf]
    %v223 = vld [vmem:[#allocation2 + $0x224] sm:$0xf]
    %v224 = vld [vmem:[#allocation2 + $0x228] sm:$0xf]
    %v225 = vld [vmem:[#allocation2 + $0x22c] sm:$0xf]
    %v226 = vld [vmem:[#allocation2 + $0x230] sm:$0xf]
    %v227 = vld [vmem:[#allocation2 + $0x234] sm:$0xf]
    %v228 = vld [vmem:[#allocation2 + $0x238] sm:$0xf]
    %v229 = vld [vmem:[#allocation2 + $0x23c] sm:$0xf]
    %v230 = vld [vmem:[#allocation2 + $0x240] sm:$0xf]
    %v231 = vld [vmem:[#allocation2 + $0x244] sm:$0xf]
    %v232 = vld [vmem:[#allocation2 + $0x248] sm:$0xf]
    %v233 = vld [vmem:[#allocation2 + $0x24c] sm:$0xf]
    %v234 = vld [vmem:[#allocation2 + $0x250] sm:$0xf]
    %v235 = vld [vmem:[#allocation2 + $0x254] sm:$0xf]
    %v236 = vld [vmem:[#allocation2 + $0x258] sm:$0xf]
    %v237 = vld [vmem:[#allocation2 + $0x25c] sm:$0xf]
    %v238 = vld [vmem:[#allocation2 + $0x260] sm:$0xf]
    %v239 = vld [vmem:[#allocation2 + $0x264] sm:$0xf]
    %v240 = vld [vmem:[#allocation2 + $0x268] sm:$0xf]
    %v241 = vld [vmem:[#allocation2 + $0x26c] sm:$0xf]
    %v242 = vld [vmem:[#allocation2 + $0x270] sm:$0xf]
    %v243 = vld [vmem:[#allocation2 + $0x274] sm:$0xf]
    %v244 = vld [vmem:[#allocation2 + $0x278] sm:$0xf]
    %v245 = vld [vmem:[#allocation2 + $0x27c] sm:$0xf]
    %v246 = vld [vmem:[#allocation2 + $0x280] sm:$0xf]
    %v247 = vld [vmem:[#allocation2 + $0x284] sm:$0xf]
    %v248 = vld [vmem:[#allocation2 + $0x288] sm:$0xf]
    %v249 = vld [vmem:[#allocation2 + $0x28c] sm:$0xf]
    %v250 = vld [vmem:[#allocation2 + $0x290] sm:$0xf]
    %v251 = vld [vmem:[#allocation2 + $0x294] sm:$0xf]
    %v252 = vld [vmem:[#allocation2 + $0x298] sm:$0xf]
    %v253 = vld [vmem:[#allocation2 + $0x29c] sm:$0xf]
    %v254 = vld [vmem:[#allocation2 + $0x2a0] sm:$0xf]
    %v255 = vld [vmem:[#allocation2 + $0x2a4] sm:$0xf]
    %v256 = vld [vmem:[#allocation2 + $0x2a8] sm:$0xf]
    %v257 = vld [vmem:[#allocation2 + $0x2ac] sm:$0xf]
    %v258 = vld [vmem:[#allocation2 + $0x2b0] sm:$0xf]
    %v259 = vld [vmem:[#allocation2 + $0x2b4] sm:$0xf]
    %v260 = vld [vmem:[#allocation2 + $0x2b8] sm:$0xf]
    %v261 = vld [vmem:[#allocation2 + $0x2bc] sm:$0xf]
    %v262 = vld [vmem:[#allocation2 + $0x2c0] sm:$0xf]
    %v263 = vld [vmem:[#allocation2 + $0x2c4] sm:$0xf]
    %v264 = vld [vmem:[#allocation2 + $0x2c8] sm:$0xf]
    %v265 = vld [vmem:[#allocation2 + $0x2cc] sm:$0xf]
    %v266 = vld [vmem:[#allocation2 + $0x2d0] sm:$0xf]
    %v267 = vld [vmem:[#allocation2 + $0x2d4] sm:$0xf]
    %v268 = vld [vmem:[#allocation2 + $0x2d8] sm:$0xf]
    %v269 = vld [vmem:[#allocation2 + $0x2dc] sm:$0xf]
    %v270 = vld [vmem:[#allocation2 + $0x2e0] sm:$0xf]
    %v271 = vld [vmem:[#allocation2 + $0x2e4] sm:$0xf]
    %v272 = vld [vmem:[#allocation2 + $0x2e8] sm:$0xf]
    %v273 = vld [vmem:[#allocation2 + $0x2ec] sm:$0xf]
    %v274 = vld [vmem:[#allocation2 + $0x2f0] sm:$0xf]
    %v275 = vld [vmem:[#allocation2 + $0x2f4] sm:$0xf]
    %v276 = vld [vmem:[#allocation2 + $0x2f8] sm:$0xf]
    %v277 = vld [vmem:[#allocation2 + $0x2fc] sm:$0xf]
    %v278 = vld [vmem:[#allocation5] sm:$0xf]
    %v279 = vld [vmem:[#allocation5 + $0x4] sm:$0xf]
    %v280 = vld [vmem:[#allocation5 + $0x8] sm:$0xf]
    %v281 = vld [vmem:[#allocation5 + $0xc] sm:$0xf]
    %v282 = vld [vmem:[#allocation5 + $0x10] sm:$0x3]
    %v283 = vld [vmem:[#allocation7] sm:$0x1]
    %v285 = vlaneseq
    %v286 = vshrl.u32 %v285, 7
    %v287 = vsub.s32 0, %v286
    %v288 = vrot.slane %v283, %v287
    %v482 = vunpack.c.l.b16 %v86
    %v483 = vunpack.c.l.b16 %v87
    %v484 = vunpack.c.l.b16 %v88
    %v485 = vunpack.c.l.b16 %v89
    %v486 = vunpack.c.l.b16 %v90
    %v487 = vunpack.c.l.b16 %v91
    %v488 = vunpack.c.l.b16 %v92
    %v489 = vunpack.c.l.b16 %v93
    %v490 = vunpack.c.l.b16 %v94
    %v491 = vunpack.c.l.b16 %v95
    %v492 = vunpack.c.l.b16 %v96
    %v493 = vunpack.c.l.b16 %v97
    %v494 = vunpack.c.l.b16 %v98
    %v495 = vunpack.c.l.b16 %v99
    %v496 = vunpack.c.l.b16 %v100
    %v497 = vunpack.c.l.b16 %v101
    %v498 = vunpack.c.l.b16 %v102
    %v499 = vunpack.c.l.b16 %v103
    %v500 = vunpack.c.l.b16 %v104
    %v501 = vunpack.c.l.b16 %v105
    %v502 = vunpack.c.l.b16 %v106
    %v503 = vunpack.c.l.b16 %v107
    %v504 = vunpack.c.l.b16 %v108
    %v505 = vunpack.c.l.b16 %v109
    %v506 = vunpack.c.l.b16 %v110
    %v507 = vunpack.c.l.b16 %v111
    %v508 = vunpack.c.l.b16 %v112
    %v509 = vunpack.c.l.b16 %v113
    %v510 = vunpack.c.l.b16 %v114
    %v511 = vunpack.c.l.b16 %v115
    %v512 = vunpack.c.l.b16 %v116
    %v513 = vunpack.c.l.b16 %v117
    %v514 = vunpack.c.l.b16 %v118
    %v515 = vunpack.c.l.b16 %v119
    %v516 = vunpack.c.l.b16 %v120
    %v517 = vunpack.c.l.b16 %v121
    %v518 = vunpack.c.l.b16 %v122
    %v519 = vunpack.c.l.b16 %v123
    %v520 = vunpack.c.l.b16 %v124
    %v521 = vunpack.c.l.b16 %v125
    %v522 = vunpack.c.l.b16 %v126
    %v523 = vunpack.c.l.b16 %v127
    %v524 = vunpack.c.l.b16 %v128
    %v525 = vunpack.c.l.b16 %v129
    %v526 = vunpack.c.l.b16 %v130
    %v527 = vunpack.c.l.b16 %v131
    %v528 = vunpack.c.l.b16 %v132
    %v529 = vunpack.c.l.b16 %v133
    %v530 = vunpack.c.l.b16 %v134
    %v531 = vunpack.c.l.b16 %v135
    %v532 = vunpack.c.l.b16 %v136
    %v533 = vunpack.c.l.b16 %v137
    %v534 = vunpack.c.l.b16 %v138
    %v535 = vunpack.c.l.b16 %v139
    %v536 = vunpack.c.l.b16 %v140
    %v537 = vunpack.c.l.b16 %v141
    %v538 = vunpack.c.l.b16 %v142
    %v539 = vunpack.c.l.b16 %v143
    %v540 = vunpack.c.l.b16 %v144
    %v541 = vunpack.c.l.b16 %v145
    %v542 = vunpack.c.l.b16 %v146
    %v543 = vunpack.c.l.b16 %v147
    %v544 = vunpack.c.l.b16 %v148
    %v545 = vunpack.c.l.b16 %v149
    %v546 = vunpack.c.l.b16 %v150
    %v547 = vunpack.c.l.b16 %v151
    %v548 = vunpack.c.l.b16 %v152
    %v549 = vunpack.c.l.b16 %v153
    %v550 = vunpack.c.l.b16 %v154
    %v551 = vunpack.c.l.b16 %v155
    %v552 = vunpack.c.l.b16 %v156
    %v553 = vunpack.c.l.b16 %v157
    %v554 = vunpack.c.l.b16 %v158
    %v555 = vunpack.c.l.b16 %v159
    %v556 = vunpack.c.l.b16 %v160
    %v557 = vunpack.c.l.b16 %v161
    %v558 = vunpack.c.l.b16 %v162
    %v559 = vunpack.c.l.b16 %v163
    %v560 = vunpack.c.l.b16 %v164
    %v561 = vunpack.c.l.b16 %v165
    %v562 = vunpack.c.l.b16 %v166
    %v563 = vunpack.c.l.b16 %v167
    %v564 = vunpack.c.l.b16 %v168
    %v565 = vunpack.c.l.b16 %v169
    %v566 = vunpack.c.l.b16 %v170
    %v567 = vunpack.c.l.b16 %v171
    %v568 = vunpack.c.l.b16 %v172
    %v569 = vunpack.c.l.b16 %v173
    %v570 = vunpack.c.l.b16 %v174
    %v571 = vunpack.c.l.b16 %v175
    %v572 = vunpack.c.l.b16 %v176
    %v573 = vunpack.c.l.b16 %v177
    %v574 = vunpack.c.l.b16 %v178
    %v575 = vunpack.c.l.b16 %v179
    %v576 = vunpack.c.l.b16 %v180
    %v577 = vunpack.c.l.b16 %v181
    %v578 = vunpack.c.l.b16 %v182
    %v579 = vunpack.c.l.b16 %v183
    %v580 = vunpack.c.l.b16 %v184
    %v581 = vunpack.c.l.b16 %v185
    %v582 = vunpack.c.l.b16 %v186
    %v583 = vunpack.c.l.b16 %v187
    %v584 = vunpack.c.l.b16 %v188
    %v585 = vunpack.c.l.b16 %v189
    %v586 = vunpack.c.l.b16 %v190
    %v587 = vunpack.c.l.b16 %v191
    %v588 = vunpack.c.l.b16 %v192
    %v589 = vunpack.c.l.b16 %v193
    %v590 = vunpack.c.l.b16 %v194
    %v591 = vunpack.c.l.b16 %v195
    %v592 = vunpack.c.l.b16 %v196
    %v593 = vunpack.c.l.b16 %v197
    %v594 = vunpack.c.l.b16 %v198
    %v595 = vunpack.c.l.b16 %v199
    %v596 = vunpack.c.l.b16 %v200
    %v597 = vunpack.c.l.b16 %v201
    %v598 = vunpack.c.l.b16 %v202
    %v599 = vunpack.c.l.b16 %v203
    %v600 = vunpack.c.l.b16 %v204
    %v601 = vunpack.c.l.b16 %v205
    %v602 = vunpack.c.l.b16 %v206
    %v603 = vunpack.c.l.b16 %v207
    %v604 = vunpack.c.l.b16 %v208
    %v605 = vunpack.c.l.b16 %v209
    %v606 = vunpack.c.l.b16 %v210
    %v607 = vunpack.c.l.b16 %v211
    %v608 = vunpack.c.l.b16 %v212
    %v609 = vunpack.c.l.b16 %v213
    %v610 = vunpack.c.l.b16 %v214
    %v611 = vunpack.c.l.b16 %v215
    %v612 = vunpack.c.l.b16 %v216
    %v613 = vunpack.c.l.b16 %v217
    %v614 = vunpack.c.l.b16 %v218
    %v615 = vunpack.c.l.b16 %v219
    %v616 = vunpack.c.l.b16 %v220
    %v617 = vunpack.c.l.b16 %v221
    %v618 = vunpack.c.l.b16 %v222
    %v619 = vunpack.c.l.b16 %v223
    %v620 = vunpack.c.l.b16 %v224
    %v621 = vunpack.c.l.b16 %v225
    %v622 = vunpack.c.l.b16 %v226
    %v623 = vunpack.c.l.b16 %v227
    %v624 = vunpack.c.l.b16 %v228
    %v625 = vunpack.c.l.b16 %v229
    %v626 = vunpack.c.l.b16 %v230
    %v627 = vunpack.c.l.b16 %v231
    %v628 = vunpack.c.l.b16 %v232
    %v629 = vunpack.c.l.b16 %v233
    %v630 = vunpack.c.l.b16 %v234
    %v631 = vunpack.c.l.b16 %v235
    %v632 = vunpack.c.l.b16 %v236
    %v633 = vunpack.c.l.b16 %v237
    %v634 = vunpack.c.l.b16 %v238
    %v635 = vunpack.c.l.b16 %v239
    %v636 = vunpack.c.l.b16 %v240
    %v637 = vunpack.c.l.b16 %v241
    %v638 = vunpack.c.l.b16 %v242
    %v639 = vunpack.c.l.b16 %v243
    %v640 = vunpack.c.l.b16 %v244
    %v641 = vunpack.c.l.b16 %v245
    %v642 = vunpack.c.l.b16 %v246
    %v643 = vunpack.c.l.b16 %v247
    %v644 = vunpack.c.l.b16 %v248
    %v645 = vunpack.c.l.b16 %v249
    %v646 = vunpack.c.l.b16 %v250
    %v647 = vunpack.c.l.b16 %v251
    %v648 = vunpack.c.l.b16 %v252
    %v649 = vunpack.c.l.b16 %v253
    %v650 = vunpack.c.l.b16 %v254
    %v651 = vunpack.c.l.b16 %v255
    %v652 = vunpack.c.l.b16 %v256
    %v653 = vunpack.c.l.b16 %v257
    %v654 = vunpack.c.l.b16 %v258
    %v655 = vunpack.c.l.b16 %v259
    %v656 = vunpack.c.l.b16 %v260
    %v657 = vunpack.c.l.b16 %v261
    %v658 = vunpack.c.l.b16 %v262
    %v659 = vunpack.c.l.b16 %v263
    %v660 = vunpack.c.l.b16 %v264
    %v661 = vunpack.c.l.b16 %v265
    %v662 = vunpack.c.l.b16 %v266
    %v663 = vunpack.c.l.b16 %v267
    %v664 = vunpack.c.l.b16 %v268
    %v665 = vunpack.c.l.b16 %v269
    %v666 = vunpack.c.l.b16 %v270
    %v667 = vunpack.c.l.b16 %v271
    %v668 = vunpack.c.l.b16 %v272
    %v669 = vunpack.c.l.b16 %v273
    %v670 = vunpack.c.l.b16 %v274
    %v671 = vunpack.c.l.b16 %v275
    %v672 = vunpack.c.l.b16 %v276
    %v673 = vunpack.c.l.b16 %v277
    %v674 = vpack.c.b16 %v483, %v482
    %v675 = vpack.c.b16 %v485, %v484
    %v676 = vpack.c.b16 %v487, %v486
    %v677 = vpack.c.b16 %v489, %v488
    %v678 = vpack.c.b16 %v491, %v490
    %v679 = vpack.c.b16 %v493, %v492
    %v680 = vpack.c.b16 %v495, %v494
    %v681 = vpack.c.b16 %v497, %v496
    %v682 = vpack.c.b16 %v499, %v498
    %v683 = vpack.c.b16 %v501, %v500
    %v684 = vpack.c.b16 %v503, %v502
    %v685 = vpack.c.b16 %v505, %v504
    %v686 = vpack.c.b16 %v507, %v506
    %v687 = vpack.c.b16 %v509, %v508
    %v688 = vpack.c.b16 %v511, %v510
    %v689 = vpack.c.b16 %v513, %v512
    %v690 = vpack.c.b16 %v515, %v514
    %v691 = vpack.c.b16 %v517, %v516
    %v692 = vpack.c.b16 %v519, %v518
    %v693 = vpack.c.b16 %v521, %v520
    %v694 = vpack.c.b16 %v523, %v522
    %v695 = vpack.c.b16 %v525, %v524
    %v696 = vpack.c.b16 %v527, %v526
    %v697 = vpack.c.b16 %v529, %v528
    %v698 = vpack.c.b16 %v531, %v530
    %v699 = vpack.c.b16 %v533, %v532
    %v700 = vpack.c.b16 %v535, %v534
    %v701 = vpack.c.b16 %v537, %v536
    %v702 = vpack.c.b16 %v539, %v538
    %v703 = vpack.c.b16 %v541, %v540
    %v704 = vpack.c.b16 %v543, %v542
    %v705 = vpack.c.b16 %v545, %v544
    %v706 = vpack.c.b16 %v547, %v546
    %v707 = vpack.c.b16 %v549, %v548
    %v708 = vpack.c.b16 %v551, %v550
    %v709 = vpack.c.b16 %v553, %v552
    %v710 = vpack.c.b16 %v555, %v554
    %v711 = vpack.c.b16 %v557, %v556
    %v712 = vpack.c.b16 %v559, %v558
    %v713 = vpack.c.b16 %v561, %v560
    %v714 = vpack.c.b16 %v563, %v562
    %v715 = vpack.c.b16 %v565, %v564
    %v716 = vpack.c.b16 %v567, %v566
    %v717 = vpack.c.b16 %v569, %v568
    %v718 = vpack.c.b16 %v571, %v570
    %v719 = vpack.c.b16 %v573, %v572
    %v720 = vpack.c.b16 %v575, %v574
    %v721 = vpack.c.b16 %v577, %v576
    %v722 = vpack.c.b16 %v579, %v578
    %v723 = vpack.c.b16 %v581, %v580
    %v724 = vpack.c.b16 %v583, %v582
    %v725 = vpack.c.b16 %v585, %v584
    %v726 = vpack.c.b16 %v587, %v586
    %v727 = vpack.c.b16 %v589, %v588
    %v728 = vpack.c.b16 %v591, %v590
    %v729 = vpack.c.b16 %v593, %v592
    %v730 = vpack.c.b16 %v595, %v594
    %v731 = vpack.c.b16 %v597, %v596
    %v732 = vpack.c.b16 %v599, %v598
    %v733 = vpack.c.b16 %v601, %v600
    %v734 = vpack.c.b16 %v603, %v602
    %v735 = vpack.c.b16 %v605, %v604
    %v736 = vpack.c.b16 %v607, %v606
    %v737 = vpack.c.b16 %v609, %v608
    %v738 = vpack.c.b16 %v611, %v610
    %v739 = vpack.c.b16 %v613, %v612
    %v740 = vpack.c.b16 %v615, %v614
    %v741 = vpack.c.b16 %v617, %v616
    %v742 = vpack.c.b16 %v619, %v618
    %v743 = vpack.c.b16 %v621, %v620
    %v744 = vpack.c.b16 %v623, %v622
    %v745 = vpack.c.b16 %v625, %v624
    %v746 = vpack.c.b16 %v627, %v626
    %v747 = vpack.c.b16 %v629, %v628
    %v748 = vpack.c.b16 %v631, %v630
    %v749 = vpack.c.b16 %v633, %v632
    %v750 = vpack.c.b16 %v635, %v634
    %v751 = vpack.c.b16 %v637, %v636
    %v752 = vpack.c.b16 %v639, %v638
    %v753 = vpack.c.b16 %v641, %v640
    %v754 = vpack.c.b16 %v643, %v642
    %v755 = vpack.c.b16 %v645, %v644
    %v756 = vpack.c.b16 %v647, %v646
    %v757 = vpack.c.b16 %v649, %v648
    %v758 = vpack.c.b16 %v651, %v650
    %v759 = vpack.c.b16 %v653, %v652
    %v760 = vpack.c.b16 %v655, %v654
    %v761 = vpack.c.b16 %v657, %v656
    %v762 = vpack.c.b16 %v659, %v658
    %v763 = vpack.c.b16 %v661, %v660
    %v764 = vpack.c.b16 %v663, %v662
    %v765 = vpack.c.b16 %v665, %v664
    %v766 = vpack.c.b16 %v667, %v666
    %v767 = vpack.c.b16 %v669, %v668
    %v768 = vpack.c.b16 %v671, %v670
    %v769 = vpack.c.b16 %v673, %v672
    %v775 = vunpack.c.l.b16 %v278
    %v776 = vunpack.c.l.b16 %v279
    %v777 = vunpack.c.l.b16 %v280
    %v778 = vunpack.c.l.b16 %v281
    %v779 = vunpack.c.l.b16 %v282
    %v780 = vpack.c.b16 %v776, %v775
    %v781 = vpack.c.b16 %v778, %v777
    %v782 = vpack.c.b16 %v779, %v779
    %vm785 = vcmask 293888
    %v787 = vsel %vm785, %v674, 0
    %v790 = vsel %vm785, %v675, 0
    %v793 = vsel %vm785, %v676, 0
    %v796 = vsel %vm785, %v677, 0
    %v799 = vsel %vm785, %v678, 0
    %v802 = vsel %vm785, %v679, 0
    %v805 = vsel %vm785, %v680, 0
    %v808 = vsel %vm785, %v681, 0
    %v811 = vsel %vm785, %v682, 0
    %v814 = vsel %vm785, %v683, 0
    %v817 = vsel %vm785, %v684, 0
    %v820 = vsel %vm785, %v685, 0
    %v823 = vsel %vm785, %v686, 0
    %v826 = vsel %vm785, %v687, 0
    %v829 = vsel %vm785, %v688, 0
    %v832 = vsel %vm785, %v689, 0
    %v835 = vsel %vm785, %v690, 0
    %v838 = vsel %vm785, %v691, 0
    %v841 = vsel %vm785, %v692, 0
    %v844 = vsel %vm785, %v693, 0
    %v847 = vsel %vm785, %v694, 0
    %v850 = vsel %vm785, %v695, 0
    %v853 = vsel %vm785, %v696, 0
    %v856 = vsel %vm785, %v697, 0
    %v859 = vsel %vm785, %v698, 0
    %v862 = vsel %vm785, %v699, 0
    %v865 = vsel %vm785, %v700, 0
    %v868 = vsel %vm785, %v701, 0
    %v871 = vsel %vm785, %v702, 0
    %v874 = vsel %vm785, %v703, 0
    %v877 = vsel %vm785, %v704, 0
    %v880 = vsel %vm785, %v705, 0
    %v883 = vsel %vm785, %v706, 0
    %v886 = vsel %vm785, %v707, 0
    %v889 = vsel %vm785, %v708, 0
    %v892 = vsel %vm785, %v709, 0
    %v895 = vsel %vm785, %v710, 0
    %v898 = vsel %vm785, %v711, 0
    %v901 = vsel %vm785, %v712, 0
    %v904 = vsel %vm785, %v713, 0
    %v907 = vsel %vm785, %v714, 0
    %v910 = vsel %vm785, %v715, 0
    %v913 = vsel %vm785, %v716, 0
    %v916 = vsel %vm785, %v717, 0
    %v919 = vsel %vm785, %v718, 0
    %v922 = vsel %vm785, %v719, 0
    %v925 = vsel %vm785, %v720, 0
    %v928 = vsel %vm785, %v721, 0
    %v931 = vsel %vm785, %v722, 0
    %v934 = vsel %vm785, %v723, 0
    %v937 = vsel %vm785, %v724, 0
    %v940 = vsel %vm785, %v725, 0
    %v943 = vsel %vm785, %v726, 0
    %v946 = vsel %vm785, %v727, 0
    %v949 = vsel %vm785, %v728, 0
    %v952 = vsel %vm785, %v729, 0
    %v955 = vsel %vm785, %v730, 0
    %v958 = vsel %vm785, %v731, 0
    %v961 = vsel %vm785, %v732, 0
    %v964 = vsel %vm785, %v733, 0
    %v967 = vsel %vm785, %v734, 0
    %v970 = vsel %vm785, %v735, 0
    %v973 = vsel %vm785, %v736, 0
    %v976 = vsel %vm785, %v737, 0
    %v979 = vsel %vm785, %v738, 0
    %v982 = vsel %vm785, %v739, 0
    %v985 = vsel %vm785, %v740, 0
    %v988 = vsel %vm785, %v741, 0
    %v991 = vsel %vm785, %v742, 0
    %v994 = vsel %vm785, %v743, 0
    %v997 = vsel %vm785, %v744, 0
    %v1000 = vsel %vm785, %v745, 0
    %v1003 = vsel %vm785, %v746, 0
    %v1006 = vsel %vm785, %v747, 0
    %v1009 = vsel %vm785, %v748, 0
    %v1012 = vsel %vm785, %v749, 0
    %v1015 = vsel %vm785, %v750, 0
    %v1018 = vsel %vm785, %v751, 0
    %v1021 = vsel %vm785, %v752, 0
    %v1024 = vsel %vm785, %v753, 0
    %v1027 = vsel %vm785, %v754, 0
    %v1030 = vsel %vm785, %v755, 0
    %v1033 = vsel %vm785, %v756, 0
    %v1036 = vsel %vm785, %v757, 0
    %v1039 = vsel %vm785, %v758, 0
    %v1042 = vsel %vm785, %v759, 0
    %v1045 = vsel %vm785, %v760, 0
    %v1048 = vsel %vm785, %v761, 0
    %v1051 = vsel %vm785, %v762, 0
    %v1054 = vsel %vm785, %v763, 0
    %v1057 = vsel %vm785, %v764, 0
    %v1060 = vsel %vm785, %v765, 0
    %v1063 = vsel %vm785, %v766, 0
    %v1066 = vsel %vm785, %v767, 0
    %v1069 = vsel %vm785, %v768, 0
    %v1072 = vsel %vm785, %v769, 0
    %vm1074 = vcmask 1041408
    %v1076 = vsel %vm1074, %v782, 0
    %1078 = vmatprep.subr.bf16.mxu0 0
    %1079 = vmatpush1.bf16.msra.mxu0 %v780
    %1080 = vmatprep.subr.bf16.mxu0 0
    %1081 = vmatpush1.bf16.msra.mxu0 %v781
    %1082 = vmatprep.subr.bf16.mxu0 0
    %1083 = vmatpush1.bf16.msra.mxu0 %v1076
    %1084 = vmatprep.subr.bf16.mxu0 0
    %1085 = vmatpush1.bf16.msra.mxu0 0
    %1086 = vmatprep.subr.bf16.mxu0 0
    %1087 = vmatpush1.bf16.msra.mxu0 0
    %1088 = vmatprep.subr.bf16.mxu0 0
    %1089 = vmatpush1.bf16.msra.mxu0 0
    %1090 = vmatprep.subr.bf16.mxu0 0
    %1091 = vmatpush1.bf16.msra.mxu0 0
    %1092 = vmatprep.subr.bf16.mxu0 0
    %1093 = vmatpush1.bf16.msra.mxu0 0
    %1094 = vmatprep.subr.bf16.mxu0 0
    %1095 = vmatpush1.bf16.msra.mxu0 0
    %1096 = vmatprep.subr.bf16.mxu0 0
    %1097 = vmatpush1.bf16.msra.mxu0 0
    %1098 = vmatprep.subr.bf16.mxu0 0
    %1099 = vmatpush1.bf16.msra.mxu0 0
    %1100 = vmatprep.subr.bf16.mxu0 0
    %1101 = vmatpush1.bf16.msra.mxu0 0
    %1102 = vmatprep.subr.bf16.mxu0 0
    %1103 = vmatpush1.bf16.msra.mxu0 0
    %1104 = vmatprep.subr.bf16.mxu0 0
    %1105 = vmatpush1.bf16.msra.mxu0 0
    %1106 = vmatprep.subr.bf16.mxu0 0
    %1107 = vmatpush1.bf16.msra.mxu0 0
    %1108 = vmatprep.subr.bf16.mxu0 0
    %1109 = vmatpush1.bf16.msra.mxu0 0
    %1110 = vmatprep.mubr.bf16.mxu0 0
    %1111 = vmatmul.mubr.bf16.gmra.mrb[0].mxu0 %v787
    %v1112 = vpop.f32.mrb[0].mxu0
    %v1113 = vadd.f32 %v288, %v1112
    %v1114 = vpop.f32.mrb[0].mxu0
    %v1115 = vpop.f32.mrb[0].mxu0
    %v1116 = vadd.f32 %v288, %v1115
    %v1117 = vpop.f32.mrb[0].mxu0
    %1118 = vmatprep.mubr.bf16.mxu0 0
    %1119 = vmatmul.mubr.bf16.gmra.mrb[0].mxu0 %v790
    %v1120 = vpop.f32.mrb[0].mxu0
    %v1121 = vadd.f32 %v288, %v1120
    %v1122 = vpop.f32.mrb[0].mxu0
    %v1123 = vpop.f32.mrb[0].mxu0
    %v1124 = vadd.f32 %v288, %v1123
    %v1125 = vpop.f32.mrb[0].mxu0
    %1126 = vmatprep.mubr.bf16.mxu0 0
    %1127 = vmatmul.mubr.bf16.gmra.mrb[0].mxu0 %v793
    %v1128 = vpop.f32.mrb[0].mxu0
    %v1129 = vadd.f32 %v288, %v1128
    %v1130 = vpop.f32.mrb[0].mxu0
    %v1131 = vpop.f32.mrb[0].mxu0
    %v1132 = vadd.f32 %v288, %v1131
    %v1133 = vpop.f32.mrb[0].mxu0
    %1134 = vmatprep.mubr.bf16.mxu0 0
    %1135 = vmatmul.mubr.bf16.gmra.mrb[0].mxu0 %v796
    %v1136 = vpop.f32.mrb[0].mxu0
    %v1137 = vadd.f32 %v288, %v1136
    %v1138 = vpop.f32.mrb[0].mxu0
    %v1139 = vpop.f32.mrb[0].mxu0
    %v1140 = vadd.f32 %v288, %v1139
    %v1141 = vpop.f32.mrb[0].mxu0
    %1142 = vmatprep.mubr.bf16.mxu0 0
    %1143 = vmatmul.mubr.bf16.gmra.mrb[0].mxu0 %v799
    %v1144 = vpop.f32.mrb[0].mxu0
    %v1145 = vadd.f32 %v288, %v1144
    %v1146 = vpop.f32.mrb[0].mxu0
    %v1147 = vpop.f32.mrb[0].mxu0
    %v1148 = vadd.f32 %v288, %v1147
    %v1149 = vpop.f32.mrb[0].mxu0
    %1150 = vmatprep.mubr.bf16.mxu0 0
    %1151 = vmatmul.mubr.bf16.gmra.mrb[0].mxu0 %v802
    %v1152 = vpop.f32.mrb[0].mxu0
    %v1153 = vadd.f32 %v288, %v1152
    %v1154 = vpop.f32.mrb[0].mxu0
    %v1155 = vpop.f32.mrb[0].mxu0
    %v1156 = vadd.f32 %v288, %v1155
    %v1157 = vpop.f32.mrb[0].mxu0
    %1158 = vmatprep.mubr.bf16.mxu0 0
    %1159 = vmatmul.mubr.bf16.gmra.mrb[0].mxu0 %v805
    %v1160 = vpop.f32.mrb[0].mxu0
    %v1161 = vadd.f32 %v288, %v1160
    %v1162 = vpop.f32.mrb[0].mxu0
    %v1163 = vpop.f32.mrb[0].mxu0
    %v1164 = vadd.f32 %v288, %v1163
    %v1165 = vpop.f32.mrb[0].mxu0
    %1166 = vmatprep.mubr.bf16.mxu0 0
    %1167 = vmatmul.mubr.bf16.gmra.mrb[0].mxu0 %v808
    %v1168 = vpop.f32.mrb[0].mxu0
    %v1169 = vadd.f32 %v288, %v1168
    %v1170 = vpop.f32.mrb[0].mxu0
    %v1171 = vpop.f32.mrb[0].mxu0
    %v1172 = vadd.f32 %v288, %v1171
    %v1173 = vpop.f32.mrb[0].mxu0
    %1174 = vmatprep.mubr.bf16.mxu0 0
    %1175 = vmatmul.mubr.bf16.gmra.mrb[0].mxu0 %v811
    %v1176 = vpop.f32.mrb[0].mxu0
    %v1177 = vadd.f32 %v288, %v1176
    %v1178 = vpop.f32.mrb[0].mxu0
    %v1179 = vpop.f32.mrb[0].mxu0
    %v1180 = vadd.f32 %v288, %v1179
    %v1181 = vpop.f32.mrb[0].mxu0
    %1182 = vmatprep.mubr.bf16.mxu0 0
    %1183 = vmatmul.mubr.bf16.gmra.mrb[0].mxu0 %v814
    %v1184 = vpop.f32.mrb[0].mxu0
    %v1185 = vadd.f32 %v288, %v1184
    %v1186 = vpop.f32.mrb[0].mxu0
    %v1187 = vpop.f32.mrb[0].mxu0
    %v1188 = vadd.f32 %v288, %v1187
    %v1189 = vpop.f32.mrb[0].mxu0
    %1190 = vmatprep.mubr.bf16.mxu0 0
    %1191 = vmatmul.mubr.bf16.gmra.mrb[0].mxu0 %v817
    %v1192 = vpop.f32.mrb[0].mxu0
    %v1193 = vadd.f32 %v288, %v1192
    %v1194 = vpop.f32.mrb[0].mxu0
    %v1195 = vpop.f32.mrb[0].mxu0
    %v1196 = vadd.f32 %v288, %v1195
    %v1197 = vpop.f32.mrb[0].mxu0
    %1198 = vmatprep.mubr.bf16.mxu0 0
    %1199 = vmatmul.mubr.bf16.gmra.mrb[0].mxu0 %v820
    %v1200 = vpop.f32.mrb[0].mxu0
    %v1201 = vadd.f32 %v288, %v1200
    %v1202 = vpop.f32.mrb[0].mxu0
    %v1203 = vpop.f32.mrb[0].mxu0
    %v1204 = vadd.f32 %v288, %v1203
    %v1205 = vpop.f32.mrb[0].mxu0
    %1206 = vmatprep.mubr.bf16.mxu0 0
    %1207 = vmatmul.mubr.bf16.gmra.mrb[0].mxu0 %v823
    %v1208 = vpop.f32.mrb[0].mxu0
    %v1209 = vadd.f32 %v288, %v1208
    %v1210 = vpop.f32.mrb[0].mxu0
    %v1211 = vpop.f32.mrb[0].mxu0
    %v1212 = vadd.f32 %v288, %v1211
    %v1213 = vpop.f32.mrb[0].mxu0
    %1214 = vmatprep.mubr.bf16.mxu0 0
    %1215 = vmatmul.mubr.bf16.gmra.mrb[0].mxu0 %v826
    %v1216 = vpop.f32.mrb[0].mxu0
    %v1217 = vadd.f32 %v288, %v1216
    %v1218 = vpop.f32.mrb[0].mxu0
    %v1219 = vpop.f32.mrb[0].mxu0
    %v1220 = vadd.f32 %v288, %v1219
    %v1221 = vpop.f32.mrb[0].mxu0
    %1222 = vmatprep.mubr.bf16.mxu0 0
    %1223 = vmatmul.mubr.bf16.gmra.mrb[0].mxu0 %v829
    %v1224 = vpop.f32.mrb[0].mxu0
    %v1225 = vadd.f32 %v288, %v1224
    %v1226 = vpop.f32.mrb[0].mxu0
    %v1227 = vpop.f32.mrb[0].mxu0
    %v1228 = vadd.f32 %v288, %v1227
    %v1229 = vpop.f32.mrb[0].mxu0
    %1230 = vmatprep.mubr.bf16.mxu0 0
    %1231 = vmatmul.mubr.bf16.gmra.mrb[0].mxu0 %v832
    %v1232 = vpop.f32.mrb[0].mxu0
    %v1233 = vadd.f32 %v288, %v1232
    %v1234 = vpop.f32.mrb[0].mxu0
    %v1235 = vpop.f32.mrb[0].mxu0
    %v1236 = vadd.f32 %v288, %v1235
    %v1237 = vpop.f32.mrb[0].mxu0
    %1238 = vmatprep.mubr.bf16.mxu0 0
    %1239 = vmatmul.mubr.bf16.gmra.mrb[0].mxu0 %v835
    %v1240 = vpop.f32.mrb[0].mxu0
    %v1241 = vadd.f32 %v288, %v1240
    %v1242 = vpop.f32.mrb[0].mxu0
    %v1243 = vpop.f32.mrb[0].mxu0
    %v1244 = vadd.f32 %v288, %v1243
    %v1245 = vpop.f32.mrb[0].mxu0
    %1246 = vmatprep.mubr.bf16.mxu0 0
    %1247 = vmatmul.mubr.bf16.gmra.mrb[0].mxu0 %v838
    %v1248 = vpop.f32.mrb[0].mxu0
    %v1249 = vadd.f32 %v288, %v1248
    %v1250 = vpop.f32.mrb[0].mxu0
    %v1251 = vpop.f32.mrb[0].mxu0
    %v1252 = vadd.f32 %v288, %v1251
    %v1253 = vpop.f32.mrb[0].mxu0
    %1254 = vmatprep.mubr.bf16.mxu0 0
    %1255 = vmatmul.mubr.bf16.gmra.mrb[0].mxu0 %v841
    %v1256 = vpop.f32.mrb[0].mxu0
    %v1257 = vadd.f32 %v288, %v1256
    %v1258 = vpop.f32.mrb[0].mxu0
    %v1259 = vpop.f32.mrb[0].mxu0
    %v1260 = vadd.f32 %v288, %v1259
    %v1261 = vpop.f32.mrb[0].mxu0
    %1262 = vmatprep.mubr.bf16.mxu0 0
    %1263 = vmatmul.mubr.bf16.gmra.mrb[0].mxu0 %v844
    %v1264 = vpop.f32.mrb[0].mxu0
    %v1265 = vadd.f32 %v288, %v1264
    %v1266 = vpop.f32.mrb[0].mxu0
    %v1267 = vpop.f32.mrb[0].mxu0
    %v1268 = vadd.f32 %v288, %v1267
    %v1269 = vpop.f32.mrb[0].mxu0
    %1270 = vmatprep.mubr.bf16.mxu0 0
    %1271 = vmatmul.mubr.bf16.gmra.mrb[0].mxu0 %v847
    %v1272 = vpop.f32.mrb[0].mxu0
    %v1273 = vadd.f32 %v288, %v1272
    %v1274 = vpop.f32.mrb[0].mxu0
    %v1275 = vpop.f32.mrb[0].mxu0
    %v1276 = vadd.f32 %v288, %v1275
    %v1277 = vpop.f32.mrb[0].mxu0
    %1278 = vmatprep.mubr.bf16.mxu0 0
    %1279 = vmatmul.mubr.bf16.gmra.mrb[0].mxu0 %v850
    %v1280 = vpop.f32.mrb[0].mxu0
    %v1281 = vadd.f32 %v288, %v1280
    %v1282 = vpop.f32.mrb[0].mxu0
    %v1283 = vpop.f32.mrb[0].mxu0
    %v1284 = vadd.f32 %v288, %v1283
    %v1285 = vpop.f32.mrb[0].mxu0
    %1286 = vmatprep.mubr.bf16.mxu0 0
    %1287 = vmatmul.mubr.bf16.gmra.mrb[0].mxu0 %v853
    %v1288 = vpop.f32.mrb[0].mxu0
    %v1289 = vadd.f32 %v288, %v1288
    %v1290 = vpop.f32.mrb[0].mxu0
    %v1291 = vpop.f32.mrb[0].mxu0
    %v1292 = vadd.f32 %v288, %v1291
    %v1293 = vpop.f32.mrb[0].mxu0
    %1294 = vmatprep.mubr.bf16.mxu0 0
    %1295 = vmatmul.mubr.bf16.gmra.mrb[0].mxu0 %v856
    %v1296 = vpop.f32.mrb[0].mxu0
    %v1297 = vadd.f32 %v288, %v1296
    %v1298 = vpop.f32.mrb[0].mxu0
    %v1299 = vpop.f32.mrb[0].mxu0
    %v1300 = vadd.f32 %v288, %v1299
    %v1301 = vpop.f32.mrb[0].mxu0
    %1302 = vmatprep.mubr.bf16.mxu0 0
    %1303 = vmatmul.mubr.bf16.gmra.mrb[0].mxu0 %v859
    %v1304 = vpop.f32.mrb[0].mxu0
    %v1305 = vadd.f32 %v288, %v1304
    %v1306 = vpop.f32.mrb[0].mxu0
    %v1307 = vpop.f32.mrb[0].mxu0
    %v1308 = vadd.f32 %v288, %v1307
    %v1309 = vpop.f32.mrb[0].mxu0
    %1310 = vmatprep.mubr.bf16.mxu0 0
    %1311 = vmatmul.mubr.bf16.gmra.mrb[0].mxu0 %v862
    %v1312 = vpop.f32.mrb[0].mxu0
    %v1313 = vadd.f32 %v288, %v1312
    %v1314 = vpop.f32.mrb[0].mxu0
    %v1315 = vpop.f32.mrb[0].mxu0
    %v1316 = vadd.f32 %v288, %v1315
    %v1317 = vpop.f32.mrb[0].mxu0
    %1318 = vmatprep.mubr.bf16.mxu0 0
    %1319 = vmatmul.mubr.bf16.gmra.mrb[0].mxu0 %v865
    %v1320 = vpop.f32.mrb[0].mxu0
    %v1321 = vadd.f32 %v288, %v1320
    %v1322 = vpop.f32.mrb[0].mxu0
    %v1323 = vpop.f32.mrb[0].mxu0
    %v1324 = vadd.f32 %v288, %v1323
    %v1325 = vpop.f32.mrb[0].mxu0
    %1326 = vmatprep.mubr.bf16.mxu0 0
    %1327 = vmatmul.mubr.bf16.gmra.mrb[0].mxu0 %v868
    %v1328 = vpop.f32.mrb[0].mxu0
    %v1329 = vadd.f32 %v288, %v1328
    %v1330 = vpop.f32.mrb[0].mxu0
    %v1331 = vpop.f32.mrb[0].mxu0
    %v1332 = vadd.f32 %v288, %v1331
    %v1333 = vpop.f32.mrb[0].mxu0
    %1334 = vmatprep.mubr.bf16.mxu0 0
    %1335 = vmatmul.mubr.bf16.gmra.mrb[0].mxu0 %v871
    %v1336 = vpop.f32.mrb[0].mxu0
    %v1337 = vadd.f32 %v288, %v1336
    %v1338 = vpop.f32.mrb[0].mxu0
    %v1339 = vpop.f32.mrb[0].mxu0
    %v1340 = vadd.f32 %v288, %v1339
    %v1341 = vpop.f32.mrb[0].mxu0
    %1342 = vmatprep.mubr.bf16.mxu0 0
    %1343 = vmatmul.mubr.bf16.gmra.mrb[0].mxu0 %v874
    %v1344 = vpop.f32.mrb[0].mxu0
    %v1345 = vadd.f32 %v288, %v1344
    %v1346 = vpop.f32.mrb[0].mxu0
    %v1347 = vpop.f32.mrb[0].mxu0
    %v1348 = vadd.f32 %v288, %v1347
    %v1349 = vpop.f32.mrb[0].mxu0
    %1350 = vmatprep.mubr.bf16.mxu0 0
    %1351 = vmatmul.mubr.bf16.gmra.mrb[0].mxu0 %v877
    %v1352 = vpop.f32.mrb[0].mxu0
    %v1353 = vadd.f32 %v288, %v1352
    %v1354 = vpop.f32.mrb[0].mxu0
    %v1355 = vpop.f32.mrb[0].mxu0
    %v1356 = vadd.f32 %v288, %v1355
    %v1357 = vpop.f32.mrb[0].mxu0
    %1358 = vmatprep.mubr.bf16.mxu0 0
    %1359 = vmatmul.mubr.bf16.gmra.mrb[0].mxu0 %v880
    %v1360 = vpop.f32.mrb[0].mxu0
    %v1361 = vadd.f32 %v288, %v1360
    %v1362 = vpop.f32.mrb[0].mxu0
    %v1363 = vpop.f32.mrb[0].mxu0
    %v1364 = vadd.f32 %v288, %v1363
    %v1365 = vpop.f32.mrb[0].mxu0
    %1366 = vmatprep.mubr.bf16.mxu0 0
    %1367 = vmatmul.mubr.bf16.gmra.mrb[0].mxu0 %v883
    %v1368 = vpop.f32.mrb[0].mxu0
    %v1369 = vadd.f32 %v288, %v1368
    %v1370 = vpop.f32.mrb[0].mxu0
    %v1371 = vpop.f32.mrb[0].mxu0
    %v1372 = vadd.f32 %v288, %v1371
    %v1373 = vpop.f32.mrb[0].mxu0
    %1374 = vmatprep.mubr.bf16.mxu0 0
    %1375 = vmatmul.mubr.bf16.gmra.mrb[0].mxu0 %v886
    %v1376 = vpop.f32.mrb[0].mxu0
    %v1377 = vadd.f32 %v288, %v1376
    %v1378 = vpop.f32.mrb[0].mxu0
    %v1379 = vpop.f32.mrb[0].mxu0
    %v1380 = vadd.f32 %v288, %v1379
    %v1381 = vpop.f32.mrb[0].mxu0
    %1382 = vmatprep.mubr.bf16.mxu0 0
    %1383 = vmatmul.mubr.bf16.gmra.mrb[0].mxu0 %v889
    %v1384 = vpop.f32.mrb[0].mxu0
    %v1385 = vadd.f32 %v288, %v1384
    %v1386 = vpop.f32.mrb[0].mxu0
    %v1387 = vpop.f32.mrb[0].mxu0
    %v1388 = vadd.f32 %v288, %v1387
    %v1389 = vpop.f32.mrb[0].mxu0
    %1390 = vmatprep.mubr.bf16.mxu0 0
    %1391 = vmatmul.mubr.bf16.gmra.mrb[0].mxu0 %v892
    %v1392 = vpop.f32.mrb[0].mxu0
    %v1393 = vadd.f32 %v288, %v1392
    %v1394 = vpop.f32.mrb[0].mxu0
    %v1395 = vpop.f32.mrb[0].mxu0
    %v1396 = vadd.f32 %v288, %v1395
    %v1397 = vpop.f32.mrb[0].mxu0
    %1398 = vmatprep.mubr.bf16.mxu0 0
    %1399 = vmatmul.mubr.bf16.gmra.mrb[0].mxu0 %v895
    %v1400 = vpop.f32.mrb[0].mxu0
    %v1401 = vadd.f32 %v288, %v1400
    %v1402 = vpop.f32.mrb[0].mxu0
    %v1403 = vpop.f32.mrb[0].mxu0
    %v1404 = vadd.f32 %v288, %v1403
    %v1405 = vpop.f32.mrb[0].mxu0
    %1406 = vmatprep.mubr.bf16.mxu0 0
    %1407 = vmatmul.mubr.bf16.gmra.mrb[0].mxu0 %v898
    %v1408 = vpop.f32.mrb[0].mxu0
    %v1409 = vadd.f32 %v288, %v1408
    %v1410 = vpop.f32.mrb[0].mxu0
    %v1411 = vpop.f32.mrb[0].mxu0
    %v1412 = vadd.f32 %v288, %v1411
    %v1413 = vpop.f32.mrb[0].mxu0
    %1414 = vmatprep.mubr.bf16.mxu0 0
    %1415 = vmatmul.mubr.bf16.gmra.mrb[0].mxu0 %v901
    %v1416 = vpop.f32.mrb[0].mxu0
    %v1417 = vadd.f32 %v288, %v1416
    %v1418 = vpop.f32.mrb[0].mxu0
    %v1419 = vpop.f32.mrb[0].mxu0
    %v1420 = vadd.f32 %v288, %v1419
    %v1421 = vpop.f32.mrb[0].mxu0
    %1422 = vmatprep.mubr.bf16.mxu0 0
    %1423 = vmatmul.mubr.bf16.gmra.mrb[0].mxu0 %v904
    %v1424 = vpop.f32.mrb[0].mxu0
    %v1425 = vadd.f32 %v288, %v1424
    %v1426 = vpop.f32.mrb[0].mxu0
    %v1427 = vpop.f32.mrb[0].mxu0
    %v1428 = vadd.f32 %v288, %v1427
    %v1429 = vpop.f32.mrb[0].mxu0
    %1430 = vmatprep.mubr.bf16.mxu0 0
    %1431 = vmatmul.mubr.bf16.gmra.mrb[0].mxu0 %v907
    %v1432 = vpop.f32.mrb[0].mxu0
    %v1433 = vadd.f32 %v288, %v1432
    %v1434 = vpop.f32.mrb[0].mxu0
    %v1435 = vpop.f32.mrb[0].mxu0
    %v1436 = vadd.f32 %v288, %v1435
    %v1437 = vpop.f32.mrb[0].mxu0
    %1438 = vmatprep.mubr.bf16.mxu0 0
    %1439 = vmatmul.mubr.bf16.gmra.mrb[0].mxu0 %v910
    %v1440 = vpop.f32.mrb[0].mxu0
    %v1441 = vadd.f32 %v288, %v1440
    %v1442 = vpop.f32.mrb[0].mxu0
    %v1443 = vpop.f32.mrb[0].mxu0
    %v1444 = vadd.f32 %v288, %v1443
    %v1445 = vpop.f32.mrb[0].mxu0
    %1446 = vmatprep.mubr.bf16.mxu0 0
    %1447 = vmatmul.mubr.bf16.gmra.mrb[0].mxu0 %v913
    %v1448 = vpop.f32.mrb[0].mxu0
    %v1449 = vadd.f32 %v288, %v1448
    %v1450 = vpop.f32.mrb[0].mxu0
    %v1451 = vpop.f32.mrb[0].mxu0
    %v1452 = vadd.f32 %v288, %v1451
    %v1453 = vpop.f32.mrb[0].mxu0
    %1454 = vmatprep.mubr.bf16.mxu0 0
    %1455 = vmatmul.mubr.bf16.gmra.mrb[0].mxu0 %v916
    %v1456 = vpop.f32.mrb[0].mxu0
    %v1457 = vadd.f32 %v288, %v1456
    %v1458 = vpop.f32.mrb[0].mxu0
    %v1459 = vpop.f32.mrb[0].mxu0
    %v1460 = vadd.f32 %v288, %v1459
    %v1461 = vpop.f32.mrb[0].mxu0
    %1462 = vmatprep.mubr.bf16.mxu0 0
    %1463 = vmatmul.mubr.bf16.gmra.mrb[0].mxu0 %v919
    %v1464 = vpop.f32.mrb[0].mxu0
    %v1465 = vadd.f32 %v288, %v1464
    %v1466 = vpop.f32.mrb[0].mxu0
    %v1467 = vpop.f32.mrb[0].mxu0
    %v1468 = vadd.f32 %v288, %v1467
    %v1469 = vpop.f32.mrb[0].mxu0
    %1470 = vmatprep.mubr.bf16.mxu0 0
    %1471 = vmatmul.mubr.bf16.gmra.mrb[0].mxu0 %v922
    %v1472 = vpop.f32.mrb[0].mxu0
    %v1473 = vadd.f32 %v288, %v1472
    %v1474 = vpop.f32.mrb[0].mxu0
    %v1475 = vpop.f32.mrb[0].mxu0
    %v1476 = vadd.f32 %v288, %v1475
    %v1477 = vpop.f32.mrb[0].mxu0
    %1478 = vmatprep.mubr.bf16.mxu0 0
    %1479 = vmatmul.mubr.bf16.gmra.mrb[0].mxu0 %v925
    %v1480 = vpop.f32.mrb[0].mxu0
    %v1481 = vadd.f32 %v288, %v1480
    %v1482 = vpop.f32.mrb[0].mxu0
    %v1483 = vpop.f32.mrb[0].mxu0
    %v1484 = vadd.f32 %v288, %v1483
    %v1485 = vpop.f32.mrb[0].mxu0
    %1486 = vmatprep.mubr.bf16.mxu0 0
    %1487 = vmatmul.mubr.bf16.gmra.mrb[0].mxu0 %v928
    %v1488 = vpop.f32.mrb[0].mxu0
    %v1489 = vadd.f32 %v288, %v1488
    %v1490 = vpop.f32.mrb[0].mxu0
    %v1491 = vpop.f32.mrb[0].mxu0
    %v1492 = vadd.f32 %v288, %v1491
    %v1493 = vpop.f32.mrb[0].mxu0
    %1494 = vmatprep.mubr.bf16.mxu0 0
    %1495 = vmatmul.mubr.bf16.gmra.mrb[0].mxu0 %v931
    %v1496 = vpop.f32.mrb[0].mxu0
    %v1497 = vadd.f32 %v288, %v1496
    %v1498 = vpop.f32.mrb[0].mxu0
    %v1499 = vpop.f32.mrb[0].mxu0
    %v1500 = vadd.f32 %v288, %v1499
    %v1501 = vpop.f32.mrb[0].mxu0
    %1502 = vmatprep.mubr.bf16.mxu0 0
    %1503 = vmatmul.mubr.bf16.gmra.mrb[0].mxu0 %v934
    %v1504 = vpop.f32.mrb[0].mxu0
    %v1505 = vadd.f32 %v288, %v1504
    %v1506 = vpop.f32.mrb[0].mxu0
    %v1507 = vpop.f32.mrb[0].mxu0
    %v1508 = vadd.f32 %v288, %v1507
    %v1509 = vpop.f32.mrb[0].mxu0
    %1510 = vmatprep.mubr.bf16.mxu0 0
    %1511 = vmatmul.mubr.bf16.gmra.mrb[0].mxu0 %v937
    %v1512 = vpop.f32.mrb[0].mxu0
    %v1513 = vadd.f32 %v288, %v1512
    %v1514 = vpop.f32.mrb[0].mxu0
    %v1515 = vpop.f32.mrb[0].mxu0
    %v1516 = vadd.f32 %v288, %v1515
    %v1517 = vpop.f32.mrb[0].mxu0
    %1518 = vmatprep.mubr.bf16.mxu0 0
    %1519 = vmatmul.mubr.bf16.gmra.mrb[0].mxu0 %v940
    %v1520 = vpop.f32.mrb[0].mxu0
    %v1521 = vadd.f32 %v288, %v1520
    %v1522 = vpop.f32.mrb[0].mxu0
    %v1523 = vpop.f32.mrb[0].mxu0
    %v1524 = vadd.f32 %v288, %v1523
    %v1525 = vpop.f32.mrb[0].mxu0
    %1526 = vmatprep.mubr.bf16.mxu0 0
    %1527 = vmatmul.mubr.bf16.gmra.mrb[0].mxu0 %v943
    %v1528 = vpop.f32.mrb[0].mxu0
    %v1529 = vadd.f32 %v288, %v1528
    %v1530 = vpop.f32.mrb[0].mxu0
    %v1531 = vpop.f32.mrb[0].mxu0
    %v1532 = vadd.f32 %v288, %v1531
    %v1533 = vpop.f32.mrb[0].mxu0
    %1534 = vmatprep.mubr.bf16.mxu0 0
    %1535 = vmatmul.mubr.bf16.gmra.mrb[0].mxu0 %v946
    %v1536 = vpop.f32.mrb[0].mxu0
    %v1537 = vadd.f32 %v288, %v1536
    %v1538 = vpop.f32.mrb[0].mxu0
    %v1539 = vpop.f32.mrb[0].mxu0
    %v1540 = vadd.f32 %v288, %v1539
    %v1541 = vpop.f32.mrb[0].mxu0
    %1542 = vmatprep.mubr.bf16.mxu0 0
    %1543 = vmatmul.mubr.bf16.gmra.mrb[0].mxu0 %v949
    %v1544 = vpop.f32.mrb[0].mxu0
    %v1545 = vadd.f32 %v288, %v1544
    %v1546 = vpop.f32.mrb[0].mxu0
    %v1547 = vpop.f32.mrb[0].mxu0
    %v1548 = vadd.f32 %v288, %v1547
    %v1549 = vpop.f32.mrb[0].mxu0
    %1550 = vmatprep.mubr.bf16.mxu0 0
    %1551 = vmatmul.mubr.bf16.gmra.mrb[0].mxu0 %v952
    %v1552 = vpop.f32.mrb[0].mxu0
    %v1553 = vadd.f32 %v288, %v1552
    %v1554 = vpop.f32.mrb[0].mxu0
    %v1555 = vpop.f32.mrb[0].mxu0
    %v1556 = vadd.f32 %v288, %v1555
    %v1557 = vpop.f32.mrb[0].mxu0
    %1558 = vmatprep.mubr.bf16.mxu0 0
    %1559 = vmatmul.mubr.bf16.gmra.mrb[0].mxu0 %v955
    %v1560 = vpop.f32.mrb[0].mxu0
    %v1561 = vadd.f32 %v288, %v1560
    %v1562 = vpop.f32.mrb[0].mxu0
    %v1563 = vpop.f32.mrb[0].mxu0
    %v1564 = vadd.f32 %v288, %v1563
    %v1565 = vpop.f32.mrb[0].mxu0
    %1566 = vmatprep.mubr.bf16.mxu0 0
    %1567 = vmatmul.mubr.bf16.gmra.mrb[0].mxu0 %v958
    %v1568 = vpop.f32.mrb[0].mxu0
    %v1569 = vadd.f32 %v288, %v1568
    %v1570 = vpop.f32.mrb[0].mxu0
    %v1571 = vpop.f32.mrb[0].mxu0
    %v1572 = vadd.f32 %v288, %v1571
    %v1573 = vpop.f32.mrb[0].mxu0
    %1574 = vmatprep.mubr.bf16.mxu0 0
    %1575 = vmatmul.mubr.bf16.gmra.mrb[0].mxu0 %v961
    %v1576 = vpop.f32.mrb[0].mxu0
    %v1577 = vadd.f32 %v288, %v1576
    %v1578 = vpop.f32.mrb[0].mxu0
    %v1579 = vpop.f32.mrb[0].mxu0
    %v1580 = vadd.f32 %v288, %v1579
    %v1581 = vpop.f32.mrb[0].mxu0
    %1582 = vmatprep.mubr.bf16.mxu0 0
    %1583 = vmatmul.mubr.bf16.gmra.mrb[0].mxu0 %v964
    %v1584 = vpop.f32.mrb[0].mxu0
    %v1585 = vadd.f32 %v288, %v1584
    %v1586 = vpop.f32.mrb[0].mxu0
    %v1587 = vpop.f32.mrb[0].mxu0
    %v1588 = vadd.f32 %v288, %v1587
    %v1589 = vpop.f32.mrb[0].mxu0
    %1590 = vmatprep.mubr.bf16.mxu0 0
    %1591 = vmatmul.mubr.bf16.gmra.mrb[0].mxu0 %v967
    %v1592 = vpop.f32.mrb[0].mxu0
    %v1593 = vadd.f32 %v288, %v1592
    %v1594 = vpop.f32.mrb[0].mxu0
    %v1595 = vpop.f32.mrb[0].mxu0
    %v1596 = vadd.f32 %v288, %v1595
    %v1597 = vpop.f32.mrb[0].mxu0
    %1598 = vmatprep.mubr.bf16.mxu0 0
    %1599 = vmatmul.mubr.bf16.gmra.mrb[0].mxu0 %v970
    %v1600 = vpop.f32.mrb[0].mxu0
    %v1601 = vadd.f32 %v288, %v1600
    %v1602 = vpop.f32.mrb[0].mxu0
    %v1603 = vpop.f32.mrb[0].mxu0
    %v1604 = vadd.f32 %v288, %v1603
    %v1605 = vpop.f32.mrb[0].mxu0
    %1606 = vmatprep.mubr.bf16.mxu0 0
    %1607 = vmatmul.mubr.bf16.gmra.mrb[0].mxu0 %v973
    %v1608 = vpop.f32.mrb[0].mxu0
    %v1609 = vadd.f32 %v288, %v1608
    %v1610 = vpop.f32.mrb[0].mxu0
    %v1611 = vpop.f32.mrb[0].mxu0
    %v1612 = vadd.f32 %v288, %v1611
    %v1613 = vpop.f32.mrb[0].mxu0
    %1614 = vmatprep.mubr.bf16.mxu0 0
    %1615 = vmatmul.mubr.bf16.gmra.mrb[0].mxu0 %v976
    %v1616 = vpop.f32.mrb[0].mxu0
    %v1617 = vadd.f32 %v288, %v1616
    %v1618 = vpop.f32.mrb[0].mxu0
    %v1619 = vpop.f32.mrb[0].mxu0
    %v1620 = vadd.f32 %v288, %v1619
    %v1621 = vpop.f32.mrb[0].mxu0
    %1622 = vmatprep.mubr.bf16.mxu0 0
    %1623 = vmatmul.mubr.bf16.gmra.mrb[0].mxu0 %v979
    %v1624 = vpop.f32.mrb[0].mxu0
    %v1625 = vadd.f32 %v288, %v1624
    %v1626 = vpop.f32.mrb[0].mxu0
    %v1627 = vpop.f32.mrb[0].mxu0
    %v1628 = vadd.f32 %v288, %v1627
    %v1629 = vpop.f32.mrb[0].mxu0
    %1630 = vmatprep.mubr.bf16.mxu0 0
    %1631 = vmatmul.mubr.bf16.gmra.mrb[0].mxu0 %v982
    %v1632 = vpop.f32.mrb[0].mxu0
    %v1633 = vadd.f32 %v288, %v1632
    %v1634 = vpop.f32.mrb[0].mxu0
    %v1635 = vpop.f32.mrb[0].mxu0
    %v1636 = vadd.f32 %v288, %v1635
    %v1637 = vpop.f32.mrb[0].mxu0
    %1638 = vmatprep.mubr.bf16.mxu0 0
    %1639 = vmatmul.mubr.bf16.gmra.mrb[0].mxu0 %v985
    %v1640 = vpop.f32.mrb[0].mxu0
    %v1641 = vadd.f32 %v288, %v1640
    %v1642 = vpop.f32.mrb[0].mxu0
    %v1643 = vpop.f32.mrb[0].mxu0
    %v1644 = vadd.f32 %v288, %v1643
    %v1645 = vpop.f32.mrb[0].mxu0
    %1646 = vmatprep.mubr.bf16.mxu0 0
    %1647 = vmatmul.mubr.bf16.gmra.mrb[0].mxu0 %v988
    %v1648 = vpop.f32.mrb[0].mxu0
    %v1649 = vadd.f32 %v288, %v1648
    %v1650 = vpop.f32.mrb[0].mxu0
    %v1651 = vpop.f32.mrb[0].mxu0
    %v1652 = vadd.f32 %v288, %v1651
    %v1653 = vpop.f32.mrb[0].mxu0
    %1654 = vmatprep.mubr.bf16.mxu0 0
    %1655 = vmatmul.mubr.bf16.gmra.mrb[0].mxu0 %v991
    %v1656 = vpop.f32.mrb[0].mxu0
    %v1657 = vadd.f32 %v288, %v1656
    %v1658 = vpop.f32.mrb[0].mxu0
    %v1659 = vpop.f32.mrb[0].mxu0
    %v1660 = vadd.f32 %v288, %v1659
    %v1661 = vpop.f32.mrb[0].mxu0
    %1662 = vmatprep.mubr.bf16.mxu0 0
    %1663 = vmatmul.mubr.bf16.gmra.mrb[0].mxu0 %v994
    %v1664 = vpop.f32.mrb[0].mxu0
    %v1665 = vadd.f32 %v288, %v1664
    %v1666 = vpop.f32.mrb[0].mxu0
    %v1667 = vpop.f32.mrb[0].mxu0
    %v1668 = vadd.f32 %v288, %v1667
    %v1669 = vpop.f32.mrb[0].mxu0
    %1670 = vmatprep.mubr.bf16.mxu0 0
    %1671 = vmatmul.mubr.bf16.gmra.mrb[0].mxu0 %v997
    %v1672 = vpop.f32.mrb[0].mxu0
    %v1673 = vadd.f32 %v288, %v1672
    %v1674 = vpop.f32.mrb[0].mxu0
    %v1675 = vpop.f32.mrb[0].mxu0
    %v1676 = vadd.f32 %v288, %v1675
    %v1677 = vpop.f32.mrb[0].mxu0
    %1678 = vmatprep.mubr.bf16.mxu0 0
    %1679 = vmatmul.mubr.bf16.gmra.mrb[0].mxu0 %v1000
    %v1680 = vpop.f32.mrb[0].mxu0
    %v1681 = vadd.f32 %v288, %v1680
    %v1682 = vpop.f32.mrb[0].mxu0
    %v1683 = vpop.f32.mrb[0].mxu0
    %v1684 = vadd.f32 %v288, %v1683
    %v1685 = vpop.f32.mrb[0].mxu0
    %1686 = vmatprep.mubr.bf16.mxu0 0
    %1687 = vmatmul.mubr.bf16.gmra.mrb[0].mxu0 %v1003
    %v1688 = vpop.f32.mrb[0].mxu0
    %v1689 = vadd.f32 %v288, %v1688
    %v1690 = vpop.f32.mrb[0].mxu0
    %v1691 = vpop.f32.mrb[0].mxu0
    %v1692 = vadd.f32 %v288, %v1691
    %v1693 = vpop.f32.mrb[0].mxu0
    %1694 = vmatprep.mubr.bf16.mxu0 0
    %1695 = vmatmul.mubr.bf16.gmra.mrb[0].mxu0 %v1006
    %v1696 = vpop.f32.mrb[0].mxu0
    %v1697 = vadd.f32 %v288, %v1696
    %v1698 = vpop.f32.mrb[0].mxu0
    %v1699 = vpop.f32.mrb[0].mxu0
    %v1700 = vadd.f32 %v288, %v1699
    %v1701 = vpop.f32.mrb[0].mxu0
    %1702 = vmatprep.mubr.bf16.mxu0 0
    %1703 = vmatmul.mubr.bf16.gmra.mrb[0].mxu0 %v1009
    %v1704 = vpop.f32.mrb[0].mxu0
    %v1705 = vadd.f32 %v288, %v1704
    %v1706 = vpop.f32.mrb[0].mxu0
    %v1707 = vpop.f32.mrb[0].mxu0
    %v1708 = vadd.f32 %v288, %v1707
    %v1709 = vpop.f32.mrb[0].mxu0
    %1710 = vmatprep.mubr.bf16.mxu0 0
    %1711 = vmatmul.mubr.bf16.gmra.mrb[0].mxu0 %v1012
    %v1712 = vpop.f32.mrb[0].mxu0
    %v1713 = vadd.f32 %v288, %v1712
    %v1714 = vpop.f32.mrb[0].mxu0
    %v1715 = vpop.f32.mrb[0].mxu0
    %v1716 = vadd.f32 %v288, %v1715
    %v1717 = vpop.f32.mrb[0].mxu0
    %1718 = vmatprep.mubr.bf16.mxu0 0
    %1719 = vmatmul.mubr.bf16.gmra.mrb[0].mxu0 %v1015
    %v1720 = vpop.f32.mrb[0].mxu0
    %v1721 = vadd.f32 %v288, %v1720
    %v1722 = vpop.f32.mrb[0].mxu0
    %v1723 = vpop.f32.mrb[0].mxu0
    %v1724 = vadd.f32 %v288, %v1723
    %v1725 = vpop.f32.mrb[0].mxu0
    %1726 = vmatprep.mubr.bf16.mxu0 0
    %1727 = vmatmul.mubr.bf16.gmra.mrb[0].mxu0 %v1018
    %v1728 = vpop.f32.mrb[0].mxu0
    %v1729 = vadd.f32 %v288, %v1728
    %v1730 = vpop.f32.mrb[0].mxu0
    %v1731 = vpop.f32.mrb[0].mxu0
    %v1732 = vadd.f32 %v288, %v1731
    %v1733 = vpop.f32.mrb[0].mxu0
    %1734 = vmatprep.mubr.bf16.mxu0 0
    %1735 = vmatmul.mubr.bf16.gmra.mrb[0].mxu0 %v1021
    %v1736 = vpop.f32.mrb[0].mxu0
    %v1737 = vadd.f32 %v288, %v1736
    %v1738 = vpop.f32.mrb[0].mxu0
    %v1739 = vpop.f32.mrb[0].mxu0
    %v1740 = vadd.f32 %v288, %v1739
    %v1741 = vpop.f32.mrb[0].mxu0
    %1742 = vmatprep.mubr.bf16.mxu0 0
    %1743 = vmatmul.mubr.bf16.gmra.mrb[0].mxu0 %v1024
    %v1744 = vpop.f32.mrb[0].mxu0
    %v1745 = vadd.f32 %v288, %v1744
    %v1746 = vpop.f32.mrb[0].mxu0
    %v1747 = vpop.f32.mrb[0].mxu0
    %v1748 = vadd.f32 %v288, %v1747
    %v1749 = vpop.f32.mrb[0].mxu0
    %1750 = vmatprep.mubr.bf16.mxu0 0
    %1751 = vmatmul.mubr.bf16.gmra.mrb[0].mxu0 %v1027
    %v1752 = vpop.f32.mrb[0].mxu0
    %v1753 = vadd.f32 %v288, %v1752
    %v1754 = vpop.f32.mrb[0].mxu0
    %v1755 = vpop.f32.mrb[0].mxu0
    %v1756 = vadd.f32 %v288, %v1755
    %v1757 = vpop.f32.mrb[0].mxu0
    %1758 = vmatprep.mubr.bf16.mxu0 0
    %1759 = vmatmul.mubr.bf16.gmra.mrb[0].mxu0 %v1030
    %v1760 = vpop.f32.mrb[0].mxu0
    %v1761 = vadd.f32 %v288, %v1760
    %v1762 = vpop.f32.mrb[0].mxu0
    %v1763 = vpop.f32.mrb[0].mxu0
    %v1764 = vadd.f32 %v288, %v1763
    %v1765 = vpop.f32.mrb[0].mxu0
    %1766 = vmatprep.mubr.bf16.mxu0 0
    %1767 = vmatmul.mubr.bf16.gmra.mrb[0].mxu0 %v1033
    %v1768 = vpop.f32.mrb[0].mxu0
    %v1769 = vadd.f32 %v288, %v1768
    %v1770 = vpop.f32.mrb[0].mxu0
    %v1771 = vpop.f32.mrb[0].mxu0
    %v1772 = vadd.f32 %v288, %v1771
    %v1773 = vpop.f32.mrb[0].mxu0
    %1774 = vmatprep.mubr.bf16.mxu0 0
    %1775 = vmatmul.mubr.bf16.gmra.mrb[0].mxu0 %v1036
    %v1776 = vpop.f32.mrb[0].mxu0
    %v1777 = vadd.f32 %v288, %v1776
    %v1778 = vpop.f32.mrb[0].mxu0
    %v1779 = vpop.f32.mrb[0].mxu0
    %v1780 = vadd.f32 %v288, %v1779
    %v1781 = vpop.f32.mrb[0].mxu0
    %1782 = vmatprep.mubr.bf16.mxu0 0
    %1783 = vmatmul.mubr.bf16.gmra.mrb[0].mxu0 %v1039
    %v1784 = vpop.f32.mrb[0].mxu0
    %v1785 = vadd.f32 %v288, %v1784
    %v1786 = vpop.f32.mrb[0].mxu0
    %v1787 = vpop.f32.mrb[0].mxu0
    %v1788 = vadd.f32 %v288, %v1787
    %v1789 = vpop.f32.mrb[0].mxu0
    %1790 = vmatprep.mubr.bf16.mxu0 0
    %1791 = vmatmul.mubr.bf16.gmra.mrb[0].mxu0 %v1042
    %v1792 = vpop.f32.mrb[0].mxu0
    %v1793 = vadd.f32 %v288, %v1792
    %v1794 = vpop.f32.mrb[0].mxu0
    %v1795 = vpop.f32.mrb[0].mxu0
    %v1796 = vadd.f32 %v288, %v1795
    %v1797 = vpop.f32.mrb[0].mxu0
    %1798 = vmatprep.mubr.bf16.mxu0 0
    %1799 = vmatmul.mubr.bf16.gmra.mrb[0].mxu0 %v1045
    %v1800 = vpop.f32.mrb[0].mxu0
    %v1801 = vadd.f32 %v288, %v1800
    %v1802 = vpop.f32.mrb[0].mxu0
    %v1803 = vpop.f32.mrb[0].mxu0
    %v1804 = vadd.f32 %v288, %v1803
    %v1805 = vpop.f32.mrb[0].mxu0
    %1806 = vmatprep.mubr.bf16.mxu0 0
    %1807 = vmatmul.mubr.bf16.gmra.mrb[0].mxu0 %v1048
    %v1808 = vpop.f32.mrb[0].mxu0
    %v1809 = vadd.f32 %v288, %v1808
    %v1810 = vpop.f32.mrb[0].mxu0
    %v1811 = vpop.f32.mrb[0].mxu0
    %v1812 = vadd.f32 %v288, %v1811
    %v1813 = vpop.f32.mrb[0].mxu0
    %1814 = vmatprep.mubr.bf16.mxu0 0
    %1815 = vmatmul.mubr.bf16.gmra.mrb[0].mxu0 %v1051
    %v1816 = vpop.f32.mrb[0].mxu0
    %v1817 = vadd.f32 %v288, %v1816
    %v1818 = vpop.f32.mrb[0].mxu0
    %v1819 = vpop.f32.mrb[0].mxu0
    %v1820 = vadd.f32 %v288, %v1819
    %v1821 = vpop.f32.mrb[0].mxu0
    %1822 = vmatprep.mubr.bf16.mxu0 0
    %1823 = vmatmul.mubr.bf16.gmra.mrb[0].mxu0 %v1054
    %v1824 = vpop.f32.mrb[0].mxu0
    %v1825 = vadd.f32 %v288, %v1824
    %v1826 = vpop.f32.mrb[0].mxu0
    %v1827 = vpop.f32.mrb[0].mxu0
    %v1828 = vadd.f32 %v288, %v1827
    %v1829 = vpop.f32.mrb[0].mxu0
    %1830 = vmatprep.mubr.bf16.mxu0 0
    %1831 = vmatmul.mubr.bf16.gmra.mrb[0].mxu0 %v1057
    %v1832 = vpop.f32.mrb[0].mxu0
    %v1833 = vadd.f32 %v288, %v1832
    %v1834 = vpop.f32.mrb[0].mxu0
    %v1835 = vpop.f32.mrb[0].mxu0
    %v1836 = vadd.f32 %v288, %v1835
    %v1837 = vpop.f32.mrb[0].mxu0
    %1838 = vmatprep.mubr.bf16.mxu0 0
    %1839 = vmatmul.mubr.bf16.gmra.mrb[0].mxu0 %v1060
    %v1840 = vpop.f32.mrb[0].mxu0
    %v1841 = vadd.f32 %v288, %v1840
    %v1842 = vpop.f32.mrb[0].mxu0
    %v1843 = vpop.f32.mrb[0].mxu0
    %v1844 = vadd.f32 %v288, %v1843
    %v1845 = vpop.f32.mrb[0].mxu0
    %1846 = vmatprep.mubr.bf16.mxu0 0
    %1847 = vmatmul.mubr.bf16.gmra.mrb[0].mxu0 %v1063
    %v1848 = vpop.f32.mrb[0].mxu0
    %v1849 = vadd.f32 %v288, %v1848
    %v1850 = vpop.f32.mrb[0].mxu0
    %v1851 = vpop.f32.mrb[0].mxu0
    %v1852 = vadd.f32 %v288, %v1851
    %v1853 = vpop.f32.mrb[0].mxu0
    %1854 = vmatprep.mubr.bf16.mxu0 0
    %1855 = vmatmul.mubr.bf16.gmra.mrb[0].mxu0 %v1066
    %v1856 = vpop.f32.mrb[0].mxu0
    %v1857 = vadd.f32 %v288, %v1856
    %v1858 = vpop.f32.mrb[0].mxu0
    %v1859 = vpop.f32.mrb[0].mxu0
    %v1860 = vadd.f32 %v288, %v1859
    %v1861 = vpop.f32.mrb[0].mxu0
    %1862 = vmatprep.mubr.bf16.mxu0 0
    %1863 = vmatmul.mubr.bf16.gmra.mrb[0].mxu0 %v1069
    %v1864 = vpop.f32.mrb[0].mxu0
    %v1865 = vadd.f32 %v288, %v1864
    %v1866 = vpop.f32.mrb[0].mxu0
    %v1867 = vpop.f32.mrb[0].mxu0
    %v1868 = vadd.f32 %v288, %v1867
    %v1869 = vpop.f32.mrb[0].mxu0
    %1870 = vmatprep.mubr.bf16.mxu0 0
    %1871 = vmatmul.mubr.bf16.gmra.mrb[0].mxu0 %v1072
    %v1872 = vpop.f32.mrb[0].mxu0
    %v1873 = vadd.f32 %v288, %v1872
    %v1874 = vpop.f32.mrb[0].mxu0
    %v1875 = vpop.f32.mrb[0].mxu0
    %v1876 = vadd.f32 %v288, %v1875
    %v1877 = vpop.f32.mrb[0].mxu0
    %1878 = vdwg.mxu0
    %v1879 = vmax.f32 %v1113, 0.0
    %v1880 = vmax.f32 %v1116, 0.0
    %v1881 = vmax.f32 %v1121, 0.0
    %v1882 = vmax.f32 %v1124, 0.0
    %v1883 = vmax.f32 %v1129, 0.0
    %v1884 = vmax.f32 %v1132, 0.0
    %v1885 = vmax.f32 %v1137, 0.0
    %v1886 = vmax.f32 %v1140, 0.0
    %v1887 = vmax.f32 %v1145, 0.0
    %v1888 = vmax.f32 %v1148, 0.0
    %v1889 = vmax.f32 %v1153, 0.0
    %v1890 = vmax.f32 %v1156, 0.0
    %v1891 = vmax.f32 %v1161, 0.0
    %v1892 = vmax.f32 %v1164, 0.0
    %v1893 = vmax.f32 %v1169, 0.0
    %v1894 = vmax.f32 %v1172, 0.0
    %v1895 = vmax.f32 %v1177, 0.0
    %v1896 = vmax.f32 %v1180, 0.0
    %v1897 = vmax.f32 %v1185, 0.0
    %v1898 = vmax.f32 %v1188, 0.0
    %v1899 = vmax.f32 %v1193, 0.0
    %v1900 = vmax.f32 %v1196, 0.0
    %v1901 = vmax.f32 %v1201, 0.0
    %v1902 = vmax.f32 %v1204, 0.0
    %v1903 = vmax.f32 %v1209, 0.0
    %v1904 = vmax.f32 %v1212, 0.0
    %v1905 = vmax.f32 %v1217, 0.0
    %v1906 = vmax.f32 %v1220, 0.0
    %v1907 = vmax.f32 %v1225, 0.0
    %v1908 = vmax.f32 %v1228, 0.0
    %v1909 = vmax.f32 %v1233, 0.0
    %v1910 = vmax.f32 %v1236, 0.0
    %v1911 = vmax.f32 %v1241, 0.0
    %v1912 = vmax.f32 %v1244, 0.0
    %v1913 = vmax.f32 %v1249, 0.0
    %v1914 = vmax.f32 %v1252, 0.0
    %v1915 = vmax.f32 %v1257, 0.0
    %v1916 = vmax.f32 %v1260, 0.0
    %v1917 = vmax.f32 %v1265, 0.0
    %v1918 = vmax.f32 %v1268, 0.0
    %v1919 = vmax.f32 %v1273, 0.0
    %v1920 = vmax.f32 %v1276, 0.0
    %v1921 = vmax.f32 %v1281, 0.0
    %v1922 = vmax.f32 %v1284, 0.0
    %v1923 = vmax.f32 %v1289, 0.0
    %v1924 = vmax.f32 %v1292, 0.0
    %v1925 = vmax.f32 %v1297, 0.0
    %v1926 = vmax.f32 %v1300, 0.0
    %v1927 = vmax.f32 %v1305, 0.0
    %v1928 = vmax.f32 %v1308, 0.0
    %v1929 = vmax.f32 %v1313, 0.0
    %v1930 = vmax.f32 %v1316, 0.0
    %v1931 = vmax.f32 %v1321, 0.0
    %v1932 = vmax.f32 %v1324, 0.0
    %v1933 = vmax.f32 %v1329, 0.0
    %v1934 = vmax.f32 %v1332, 0.0
    %v1935 = vmax.f32 %v1337, 0.0
    %v1936 = vmax.f32 %v1340, 0.0
    %v1937 = vmax.f32 %v1345, 0.0
    %v1938 = vmax.f32 %v1348, 0.0
    %v1939 = vmax.f32 %v1353, 0.0
    %v1940 = vmax.f32 %v1356, 0.0
    %v1941 = vmax.f32 %v1361, 0.0
    %v1942 = vmax.f32 %v1364, 0.0
    %v1943 = vmax.f32 %v1369, 0.0
    %v1944 = vmax.f32 %v1372, 0.0
    %v1945 = vmax.f32 %v1377, 0.0
    %v1946 = vmax.f32 %v1380, 0.0
    %v1947 = vmax.f32 %v1385, 0.0
    %v1948 = vmax.f32 %v1388, 0.0
    %v1949 = vmax.f32 %v1393, 0.0
    %v1950 = vmax.f32 %v1396, 0.0
    %v1951 = vmax.f32 %v1401, 0.0
    %v1952 = vmax.f32 %v1404, 0.0
    %v1953 = vmax.f32 %v1409, 0.0
    %v1954 = vmax.f32 %v1412, 0.0
    %v1955 = vmax.f32 %v1417, 0.0
    %v1956 = vmax.f32 %v1420, 0.0
    %v1957 = vmax.f32 %v1425, 0.0
    %v1958 = vmax.f32 %v1428, 0.0
    %v1959 = vmax.f32 %v1433, 0.0
    %v1960 = vmax.f32 %v1436, 0.0
    %v1961 = vmax.f32 %v1441, 0.0
    %v1962 = vmax.f32 %v1444, 0.0
    %v1963 = vmax.f32 %v1449, 0.0
    %v1964 = vmax.f32 %v1452, 0.0
    %v1965 = vmax.f32 %v1457, 0.0
    %v1966 = vmax.f32 %v1460, 0.0
    %v1967 = vmax.f32 %v1465, 0.0
    %v1968 = vmax.f32 %v1468, 0.0
    %v1969 = vmax.f32 %v1473, 0.0
    %v1970 = vmax.f32 %v1476, 0.0
    %v1971 = vmax.f32 %v1481, 0.0
    %v1972 = vmax.f32 %v1484, 0.0
    %v1973 = vmax.f32 %v1489, 0.0
    %v1974 = vmax.f32 %v1492, 0.0
    %v1975 = vmax.f32 %v1497, 0.0
    %v1976 = vmax.f32 %v1500, 0.0
    %v1977 = vmax.f32 %v1505, 0.0
    %v1978 = vmax.f32 %v1508, 0.0
    %v1979 = vmax.f32 %v1513, 0.0
    %v1980 = vmax.f32 %v1516, 0.0
    %v1981 = vmax.f32 %v1521, 0.0
    %v1982 = vmax.f32 %v1524, 0.0
    %v1983 = vmax.f32 %v1529, 0.0
    %v1984 = vmax.f32 %v1532, 0.0
    %v1985 = vmax.f32 %v1537, 0.0
    %v1986 = vmax.f32 %v1540, 0.0
    %v1987 = vmax.f32 %v1545, 0.0
    %v1988 = vmax.f32 %v1548, 0.0
    %v1989 = vmax.f32 %v1553, 0.0
    %v1990 = vmax.f32 %v1556, 0.0
    %v1991 = vmax.f32 %v1561, 0.0
    %v1992 = vmax.f32 %v1564, 0.0
    %v1993 = vmax.f32 %v1569, 0.0
    %v1994 = vmax.f32 %v1572, 0.0
    %v1995 = vmax.f32 %v1577, 0.0
    %v1996 = vmax.f32 %v1580, 0.0
    %v1997 = vmax.f32 %v1585, 0.0
    %v1998 = vmax.f32 %v1588, 0.0
    %v1999 = vmax.f32 %v1593, 0.0
    %v2000 = vmax.f32 %v1596, 0.0
    %v2001 = vmax.f32 %v1601, 0.0
    %v2002 = vmax.f32 %v1604, 0.0
    %v2003 = vmax.f32 %v1609, 0.0
    %v2004 = vmax.f32 %v1612, 0.0
    %v2005 = vmax.f32 %v1617, 0.0
    %v2006 = vmax.f32 %v1620, 0.0
    %v2007 = vmax.f32 %v1625, 0.0
    %v2008 = vmax.f32 %v1628, 0.0
    %v2009 = vmax.f32 %v1633, 0.0
    %v2010 = vmax.f32 %v1636, 0.0
    %v2011 = vmax.f32 %v1641, 0.0
    %v2012 = vmax.f32 %v1644, 0.0
    %v2013 = vmax.f32 %v1649, 0.0
    %v2014 = vmax.f32 %v1652, 0.0
    %v2015 = vmax.f32 %v1657, 0.0
    %v2016 = vmax.f32 %v1660, 0.0
    %v2017 = vmax.f32 %v1665, 0.0
    %v2018 = vmax.f32 %v1668, 0.0
    %v2019 = vmax.f32 %v1673, 0.0
    %v2020 = vmax.f32 %v1676, 0.0
    %v2021 = vmax.f32 %v1681, 0.0
    %v2022 = vmax.f32 %v1684, 0.0
    %v2023 = vmax.f32 %v1689, 0.0
    %v2024 = vmax.f32 %v1692, 0.0
    %v2025 = vmax.f32 %v1697, 0.0
    %v2026 = vmax.f32 %v1700, 0.0
    %v2027 = vmax.f32 %v1705, 0.0
    %v2028 = vmax.f32 %v1708, 0.0
    %v2029 = vmax.f32 %v1713, 0.0
    %v2030 = vmax.f32 %v1716, 0.0
    %v2031 = vmax.f32 %v1721, 0.0
    %v2032 = vmax.f32 %v1724, 0.0
    %v2033 = vmax.f32 %v1729, 0.0
    %v2034 = vmax.f32 %v1732, 0.0
    %v2035 = vmax.f32 %v1737, 0.0
    %v2036 = vmax.f32 %v1740, 0.0
    %v2037 = vmax.f32 %v1745, 0.0
    %v2038 = vmax.f32 %v1748, 0.0
    %v2039 = vmax.f32 %v1753, 0.0
    %v2040 = vmax.f32 %v1756, 0.0
    %v2041 = vmax.f32 %v1761, 0.0
    %v2042 = vmax.f32 %v1764, 0.0
    %v2043 = vmax.f32 %v1769, 0.0
    %v2044 = vmax.f32 %v1772, 0.0
    %v2045 = vmax.f32 %v1777, 0.0
    %v2046 = vmax.f32 %v1780, 0.0
    %v2047 = vmax.f32 %v1785, 0.0
    %v2048 = vmax.f32 %v1788, 0.0
    %v2049 = vmax.f32 %v1793, 0.0
    %v2050 = vmax.f32 %v1796, 0.0
    %v2051 = vmax.f32 %v1801, 0.0
    %v2052 = vmax.f32 %v1804, 0.0
    %v2053 = vmax.f32 %v1809, 0.0
    %v2054 = vmax.f32 %v1812, 0.0
    %v2055 = vmax.f32 %v1817, 0.0
    %v2056 = vmax.f32 %v1820, 0.0
    %v2057 = vmax.f32 %v1825, 0.0
    %v2058 = vmax.f32 %v1828, 0.0
    %v2059 = vmax.f32 %v1833, 0.0
    %v2060 = vmax.f32 %v1836, 0.0
    %v2061 = vmax.f32 %v1841, 0.0
    %v2062 = vmax.f32 %v1844, 0.0
    %v2063 = vmax.f32 %v1849, 0.0
    %v2064 = vmax.f32 %v1852, 0.0
    %v2065 = vmax.f32 %v1857, 0.0
    %v2066 = vmax.f32 %v1860, 0.0
    %v2067 = vmax.f32 %v1865, 0.0
    %v2068 = vmax.f32 %v1868, 0.0
    %v2069 = vmax.f32 %v1873, 0.0
    %v2070 = vmax.f32 %v1876, 0.0
    %vm2071 = vcmask 261120
    %v2072 = vsel %vm2071, %v1879, 0.0
    %v2073 = vsel %vm2071, %v1880, 0.0
    %v2074 = vadd.f32 %v2072, %v2073
    %v2075 = vsel %vm2071, %v1881, 0.0
    %v2076 = vadd.f32 %v2074, %v2075
    %v2077 = vsel %vm2071, %v1882, 0.0
    %v2078 = vadd.f32 %v2076, %v2077
    %v2079 = vsel %vm2071, %v1883, 0.0
    %v2080 = vadd.f32 %v2078, %v2079
    %v2081 = vsel %vm2071, %v1884, 0.0
    %v2082 = vadd.f32 %v2080, %v2081
    %v2083 = vsel %vm2071, %v1885, 0.0
    %v2084 = vadd.f32 %v2082, %v2083
    %v2085 = vsel %vm2071, %v1886, 0.0
    %v2086 = vadd.f32 %v2084, %v2085
    %v2087 = vsel %vm2071, %v1887, 0.0
    %v2088 = vadd.f32 %v2086, %v2087
    %v2089 = vsel %vm2071, %v1888, 0.0
    %v2090 = vadd.f32 %v2088, %v2089
    %v2091 = vsel %vm2071, %v1889, 0.0
    %v2092 = vadd.f32 %v2090, %v2091
    %v2093 = vsel %vm2071, %v1890, 0.0
    %v2094 = vadd.f32 %v2092, %v2093
    %v2095 = vsel %vm2071, %v1891, 0.0
    %v2096 = vadd.f32 %v2094, %v2095
    %v2097 = vsel %vm2071, %v1892, 0.0
    %v2098 = vadd.f32 %v2096, %v2097
    %v2099 = vsel %vm2071, %v1893, 0.0
    %v2100 = vadd.f32 %v2098, %v2099
    %v2101 = vsel %vm2071, %v1894, 0.0
    %v2102 = vadd.f32 %v2100, %v2101
    %v2103 = vsel %vm2071, %v1895, 0.0
    %v2104 = vadd.f32 %v2102, %v2103
    %v2105 = vsel %vm2071, %v1896, 0.0
    %v2106 = vadd.f32 %v2104, %v2105
    %v2107 = vsel %vm2071, %v1897, 0.0
    %v2108 = vadd.f32 %v2106, %v2107
    %v2109 = vsel %vm2071, %v1898, 0.0
    %v2110 = vadd.f32 %v2108, %v2109
    %v2111 = vsel %vm2071, %v1899, 0.0
    %v2112 = vadd.f32 %v2110, %v2111
    %v2113 = vsel %vm2071, %v1900, 0.0
    %v2114 = vadd.f32 %v2112, %v2113
    %v2115 = vsel %vm2071, %v1901, 0.0
    %v2116 = vadd.f32 %v2114, %v2115
    %v2117 = vsel %vm2071, %v1902, 0.0
    %v2118 = vadd.f32 %v2116, %v2117
    %v2119 = vsel %vm2071, %v1903, 0.0
    %v2120 = vadd.f32 %v2118, %v2119
    %v2121 = vsel %vm2071, %v1904, 0.0
    %v2122 = vadd.f32 %v2120, %v2121
    %v2123 = vsel %vm2071, %v1905, 0.0
    %v2124 = vadd.f32 %v2122, %v2123
    %v2125 = vsel %vm2071, %v1906, 0.0
    %v2126 = vadd.f32 %v2124, %v2125
    %v2127 = vsel %vm2071, %v1907, 0.0
    %v2128 = vadd.f32 %v2126, %v2127
    %v2129 = vsel %vm2071, %v1908, 0.0
    %v2130 = vadd.f32 %v2128, %v2129
    %v2131 = vsel %vm2071, %v1909, 0.0
    %v2132 = vadd.f32 %v2130, %v2131
    %v2133 = vsel %vm2071, %v1910, 0.0
    %v2134 = vadd.f32 %v2132, %v2133
    %v2135 = vrot.slane %v2134, 4
    %v2136 = vadd.f32 %v2134, %v2135
    %v2137 = vrot.slane %v2136, 2
    %v2138 = vadd.f32 %v2136, %v2137
    %v2139 = vrot.slane %v2138, 1
    %v2140 = vadd.f32 %v2138, %v2139
    %v2141 = vsel %vm2071, %v1911, 0.0
    %v2142 = vsel %vm2071, %v1912, 0.0
    %v2143 = vadd.f32 %v2141, %v2142
    %v2144 = vsel %vm2071, %v1913, 0.0
    %v2145 = vadd.f32 %v2143, %v2144
    %v2146 = vsel %vm2071, %v1914, 0.0
    %v2147 = vadd.f32 %v2145, %v2146
    %v2148 = vsel %vm2071, %v1915, 0.0
    %v2149 = vadd.f32 %v2147, %v2148
    %v2150 = vsel %vm2071, %v1916, 0.0
    %v2151 = vadd.f32 %v2149, %v2150
    %v2152 = vsel %vm2071, %v1917, 0.0
    %v2153 = vadd.f32 %v2151, %v2152
    %v2154 = vsel %vm2071, %v1918, 0.0
    %v2155 = vadd.f32 %v2153, %v2154
    %v2156 = vsel %vm2071, %v1919, 0.0
    %v2157 = vadd.f32 %v2155, %v2156
    %v2158 = vsel %vm2071, %v1920, 0.0
    %v2159 = vadd.f32 %v2157, %v2158
    %v2160 = vsel %vm2071, %v1921, 0.0
    %v2161 = vadd.f32 %v2159, %v2160
    %v2162 = vsel %vm2071, %v1922, 0.0
    %v2163 = vadd.f32 %v2161, %v2162
    %v2164 = vsel %vm2071, %v1923, 0.0
    %v2165 = vadd.f32 %v2163, %v2164
    %v2166 = vsel %vm2071, %v1924, 0.0
    %v2167 = vadd.f32 %v2165, %v2166
    %v2168 = vsel %vm2071, %v1925, 0.0
    %v2169 = vadd.f32 %v2167, %v2168
    %v2170 = vsel %vm2071, %v1926, 0.0
    %v2171 = vadd.f32 %v2169, %v2170
    %v2172 = vsel %vm2071, %v1927, 0.0
    %v2173 = vadd.f32 %v2171, %v2172
    %v2174 = vsel %vm2071, %v1928, 0.0
    %v2175 = vadd.f32 %v2173, %v2174
    %v2176 = vsel %vm2071, %v1929, 0.0
    %v2177 = vadd.f32 %v2175, %v2176
    %v2178 = vsel %vm2071, %v1930, 0.0
    %v2179 = vadd.f32 %v2177, %v2178
    %v2180 = vsel %vm2071, %v1931, 0.0
    %v2181 = vadd.f32 %v2179, %v2180
    %v2182 = vsel %vm2071, %v1932, 0.0
    %v2183 = vadd.f32 %v2181, %v2182
    %v2184 = vsel %vm2071, %v1933, 0.0
    %v2185 = vadd.f32 %v2183, %v2184
    %v2186 = vsel %vm2071, %v1934, 0.0
    %v2187 = vadd.f32 %v2185, %v2186
    %v2188 = vsel %vm2071, %v1935, 0.0
    %v2189 = vadd.f32 %v2187, %v2188
    %v2190 = vsel %vm2071, %v1936, 0.0
    %v2191 = vadd.f32 %v2189, %v2190
    %v2192 = vsel %vm2071, %v1937, 0.0
    %v2193 = vadd.f32 %v2191, %v2192
    %v2194 = vsel %vm2071, %v1938, 0.0
    %v2195 = vadd.f32 %v2193, %v2194
    %v2196 = vsel %vm2071, %v1939, 0.0
    %v2197 = vadd.f32 %v2195, %v2196
    %v2198 = vsel %vm2071, %v1940, 0.0
    %v2199 = vadd.f32 %v2197, %v2198
    %v2200 = vsel %vm2071, %v1941, 0.0
    %v2201 = vadd.f32 %v2199, %v2200
    %v2202 = vsel %vm2071, %v1942, 0.0
    %v2203 = vadd.f32 %v2201, %v2202
    %v2204 = vrot.slane %v2203, 4
    %v2205 = vadd.f32 %v2203, %v2204
    %v2206 = vrot.slane %v2205, 2
    %v2207 = vadd.f32 %v2205, %v2206
    %v2208 = vrot.slane %v2207, 1
    %v2209 = vadd.f32 %v2207, %v2208
    %v2210 = vsel %vm2071, %v1943, 0.0
    %v2211 = vsel %vm2071, %v1944, 0.0
    %v2212 = vadd.f32 %v2210, %v2211
    %v2213 = vsel %vm2071, %v1945, 0.0
    %v2214 = vadd.f32 %v2212, %v2213
    %v2215 = vsel %vm2071, %v1946, 0.0
    %v2216 = vadd.f32 %v2214, %v2215
    %v2217 = vsel %vm2071, %v1947, 0.0
    %v2218 = vadd.f32 %v2216, %v2217
    %v2219 = vsel %vm2071, %v1948, 0.0
    %v2220 = vadd.f32 %v2218, %v2219
    %v2221 = vsel %vm2071, %v1949, 0.0
    %v2222 = vadd.f32 %v2220, %v2221
    %v2223 = vsel %vm2071, %v1950, 0.0
    %v2224 = vadd.f32 %v2222, %v2223
    %v2225 = vsel %vm2071, %v1951, 0.0
    %v2226 = vadd.f32 %v2224, %v2225
    %v2227 = vsel %vm2071, %v1952, 0.0
    %v2228 = vadd.f32 %v2226, %v2227
    %v2229 = vsel %vm2071, %v1953, 0.0
    %v2230 = vadd.f32 %v2228, %v2229
    %v2231 = vsel %vm2071, %v1954, 0.0
    %v2232 = vadd.f32 %v2230, %v2231
    %v2233 = vsel %vm2071, %v1955, 0.0
    %v2234 = vadd.f32 %v2232, %v2233
    %v2235 = vsel %vm2071, %v1956, 0.0
    %v2236 = vadd.f32 %v2234, %v2235
    %v2237 = vsel %vm2071, %v1957, 0.0
    %v2238 = vadd.f32 %v2236, %v2237
    %v2239 = vsel %vm2071, %v1958, 0.0
    %v2240 = vadd.f32 %v2238, %v2239
    %v2241 = vsel %vm2071, %v1959, 0.0
    %v2242 = vadd.f32 %v2240, %v2241
    %v2243 = vsel %vm2071, %v1960, 0.0
    %v2244 = vadd.f32 %v2242, %v2243
    %v2245 = vsel %vm2071, %v1961, 0.0
    %v2246 = vadd.f32 %v2244, %v2245
    %v2247 = vsel %vm2071, %v1962, 0.0
    %v2248 = vadd.f32 %v2246, %v2247
    %v2249 = vsel %vm2071, %v1963, 0.0
    %v2250 = vadd.f32 %v2248, %v2249
    %v2251 = vsel %vm2071, %v1964, 0.0
    %v2252 = vadd.f32 %v2250, %v2251
    %v2253 = vsel %vm2071, %v1965, 0.0
    %v2254 = vadd.f32 %v2252, %v2253
    %v2255 = vsel %vm2071, %v1966, 0.0
    %v2256 = vadd.f32 %v2254, %v2255
    %v2257 = vsel %vm2071, %v1967, 0.0
    %v2258 = vadd.f32 %v2256, %v2257
    %v2259 = vsel %vm2071, %v1968, 0.0
    %v2260 = vadd.f32 %v2258, %v2259
    %v2261 = vsel %vm2071, %v1969, 0.0
    %v2262 = vadd.f32 %v2260, %v2261
    %v2263 = vsel %vm2071, %v1970, 0.0
    %v2264 = vadd.f32 %v2262, %v2263
    %v2265 = vsel %vm2071, %v1971, 0.0
    %v2266 = vadd.f32 %v2264, %v2265
    %v2267 = vsel %vm2071, %v1972, 0.0
    %v2268 = vadd.f32 %v2266, %v2267
    %v2269 = vsel %vm2071, %v1973, 0.0
    %v2270 = vadd.f32 %v2268, %v2269
    %v2271 = vsel %vm2071, %v1974, 0.0
    %v2272 = vadd.f32 %v2270, %v2271
    %v2273 = vrot.slane %v2272, 4
    %v2274 = vadd.f32 %v2272, %v2273
    %v2275 = vrot.slane %v2274, 2
    %v2276 = vadd.f32 %v2274, %v2275
    %v2277 = vrot.slane %v2276, 1
    %v2278 = vadd.f32 %v2276, %v2277
    %v2279 = vsel %vm2071, %v1975, 0.0
    %v2280 = vsel %vm2071, %v1976, 0.0
    %v2281 = vadd.f32 %v2279, %v2280
    %v2282 = vsel %vm2071, %v1977, 0.0
    %v2283 = vadd.f32 %v2281, %v2282
    %v2284 = vsel %vm2071, %v1978, 0.0
    %v2285 = vadd.f32 %v2283, %v2284
    %v2286 = vsel %vm2071, %v1979, 0.0
    %v2287 = vadd.f32 %v2285, %v2286
    %v2288 = vsel %vm2071, %v1980, 0.0
    %v2289 = vadd.f32 %v2287, %v2288
    %v2290 = vsel %vm2071, %v1981, 0.0
    %v2291 = vadd.f32 %v2289, %v2290
    %v2292 = vsel %vm2071, %v1982, 0.0
    %v2293 = vadd.f32 %v2291, %v2292
    %v2294 = vsel %vm2071, %v1983, 0.0
    %v2295 = vadd.f32 %v2293, %v2294
    %v2296 = vsel %vm2071, %v1984, 0.0
    %v2297 = vadd.f32 %v2295, %v2296
    %v2298 = vsel %vm2071, %v1985, 0.0
    %v2299 = vadd.f32 %v2297, %v2298
    %v2300 = vsel %vm2071, %v1986, 0.0
    %v2301 = vadd.f32 %v2299, %v2300
    %v2302 = vsel %vm2071, %v1987, 0.0
    %v2303 = vadd.f32 %v2301, %v2302
    %v2304 = vsel %vm2071, %v1988, 0.0
    %v2305 = vadd.f32 %v2303, %v2304
    %v2306 = vsel %vm2071, %v1989, 0.0
    %v2307 = vadd.f32 %v2305, %v2306
    %v2308 = vsel %vm2071, %v1990, 0.0
    %v2309 = vadd.f32 %v2307, %v2308
    %v2310 = vsel %vm2071, %v1991, 0.0
    %v2311 = vadd.f32 %v2309, %v2310
    %v2312 = vsel %vm2071, %v1992, 0.0
    %v2313 = vadd.f32 %v2311, %v2312
    %v2314 = vsel %vm2071, %v1993, 0.0
    %v2315 = vadd.f32 %v2313, %v2314
    %v2316 = vsel %vm2071, %v1994, 0.0
    %v2317 = vadd.f32 %v2315, %v2316
    %v2318 = vsel %vm2071, %v1995, 0.0
    %v2319 = vadd.f32 %v2317, %v2318
    %v2320 = vsel %vm2071, %v1996, 0.0
    %v2321 = vadd.f32 %v2319, %v2320
    %v2322 = vsel %vm2071, %v1997, 0.0
    %v2323 = vadd.f32 %v2321, %v2322
    %v2324 = vsel %vm2071, %v1998, 0.0
    %v2325 = vadd.f32 %v2323, %v2324
    %v2326 = vsel %vm2071, %v1999, 0.0
    %v2327 = vadd.f32 %v2325, %v2326
    %v2328 = vsel %vm2071, %v2000, 0.0
    %v2329 = vadd.f32 %v2327, %v2328
    %v2330 = vsel %vm2071, %v2001, 0.0
    %v2331 = vadd.f32 %v2329, %v2330
    %v2332 = vsel %vm2071, %v2002, 0.0
    %v2333 = vadd.f32 %v2331, %v2332
    %v2334 = vsel %vm2071, %v2003, 0.0
    %v2335 = vadd.f32 %v2333, %v2334
    %v2336 = vsel %vm2071, %v2004, 0.0
    %v2337 = vadd.f32 %v2335, %v2336
    %v2338 = vsel %vm2071, %v2005, 0.0
    %v2339 = vadd.f32 %v2337, %v2338
    %v2340 = vsel %vm2071, %v2006, 0.0
    %v2341 = vadd.f32 %v2339, %v2340
    %v2342 = vrot.slane %v2341, 4
    %v2343 = vadd.f32 %v2341, %v2342
    %v2344 = vrot.slane %v2343, 2
    %v2345 = vadd.f32 %v2343, %v2344
    %v2346 = vrot.slane %v2345, 1
    %v2347 = vadd.f32 %v2345, %v2346
    %v2348 = vsel %vm2071, %v2007, 0.0
    %v2349 = vsel %vm2071, %v2008, 0.0
    %v2350 = vadd.f32 %v2348, %v2349
    %v2351 = vsel %vm2071, %v2009, 0.0
    %v2352 = vadd.f32 %v2350, %v2351
    %v2353 = vsel %vm2071, %v2010, 0.0
    %v2354 = vadd.f32 %v2352, %v2353
    %v2355 = vsel %vm2071, %v2011, 0.0
    %v2356 = vadd.f32 %v2354, %v2355
    %v2357 = vsel %vm2071, %v2012, 0.0
    %v2358 = vadd.f32 %v2356, %v2357
    %v2359 = vsel %vm2071, %v2013, 0.0
    %v2360 = vadd.f32 %v2358, %v2359
    %v2361 = vsel %vm2071, %v2014, 0.0
    %v2362 = vadd.f32 %v2360, %v2361
    %v2363 = vsel %vm2071, %v2015, 0.0
    %v2364 = vadd.f32 %v2362, %v2363
    %v2365 = vsel %vm2071, %v2016, 0.0
    %v2366 = vadd.f32 %v2364, %v2365
    %v2367 = vsel %vm2071, %v2017, 0.0
    %v2368 = vadd.f32 %v2366, %v2367
    %v2369 = vsel %vm2071, %v2018, 0.0
    %v2370 = vadd.f32 %v2368, %v2369
    %v2371 = vsel %vm2071, %v2019, 0.0
    %v2372 = vadd.f32 %v2370, %v2371
    %v2373 = vsel %vm2071, %v2020, 0.0
    %v2374 = vadd.f32 %v2372, %v2373
    %v2375 = vsel %vm2071, %v2021, 0.0
    %v2376 = vadd.f32 %v2374, %v2375
    %v2377 = vsel %vm2071, %v2022, 0.0
    %v2378 = vadd.f32 %v2376, %v2377
    %v2379 = vsel %vm2071, %v2023, 0.0
    %v2380 = vadd.f32 %v2378, %v2379
    %v2381 = vsel %vm2071, %v2024, 0.0
    %v2382 = vadd.f32 %v2380, %v2381
    %v2383 = vsel %vm2071, %v2025, 0.0
    %v2384 = vadd.f32 %v2382, %v2383
    %v2385 = vsel %vm2071, %v2026, 0.0
    %v2386 = vadd.f32 %v2384, %v2385
    %v2387 = vsel %vm2071, %v2027, 0.0
    %v2388 = vadd.f32 %v2386, %v2387
    %v2389 = vsel %vm2071, %v2028, 0.0
    %v2390 = vadd.f32 %v2388, %v2389
    %v2391 = vsel %vm2071, %v2029, 0.0
    %v2392 = vadd.f32 %v2390, %v2391
    %v2393 = vsel %vm2071, %v2030, 0.0
    %v2394 = vadd.f32 %v2392, %v2393
    %v2395 = vsel %vm2071, %v2031, 0.0
    %v2396 = vadd.f32 %v2394, %v2395
    %v2397 = vsel %vm2071, %v2032, 0.0
    %v2398 = vadd.f32 %v2396, %v2397
    %v2399 = vsel %vm2071, %v2033, 0.0
    %v2400 = vadd.f32 %v2398, %v2399
    %v2401 = vsel %vm2071, %v2034, 0.0
    %v2402 = vadd.f32 %v2400, %v2401
    %v2403 = vsel %vm2071, %v2035, 0.0
    %v2404 = vadd.f32 %v2402, %v2403
    %v2405 = vsel %vm2071, %v2036, 0.0
    %v2406 = vadd.f32 %v2404, %v2405
    %v2407 = vsel %vm2071, %v2037, 0.0
    %v2408 = vadd.f32 %v2406, %v2407
    %v2409 = vsel %vm2071, %v2038, 0.0
    %v2410 = vadd.f32 %v2408, %v2409
    %v2411 = vrot.slane %v2410, 4
    %v2412 = vadd.f32 %v2410, %v2411
    %v2413 = vrot.slane %v2412, 2
    %v2414 = vadd.f32 %v2412, %v2413
    %v2415 = vrot.slane %v2414, 1
    %v2416 = vadd.f32 %v2414, %v2415
    %v2417 = vsel %vm2071, %v2039, 0.0
    %v2418 = vsel %vm2071, %v2040, 0.0
    %v2419 = vadd.f32 %v2417, %v2418
    %v2420 = vsel %vm2071, %v2041, 0.0
    %v2421 = vadd.f32 %v2419, %v2420
    %v2422 = vsel %vm2071, %v2042, 0.0
    %v2423 = vadd.f32 %v2421, %v2422
    %v2424 = vsel %vm2071, %v2043, 0.0
    %v2425 = vadd.f32 %v2423, %v2424
    %v2426 = vsel %vm2071, %v2044, 0.0
    %v2427 = vadd.f32 %v2425, %v2426
    %v2428 = vsel %vm2071, %v2045, 0.0
    %v2429 = vadd.f32 %v2427, %v2428
    %v2430 = vsel %vm2071, %v2046, 0.0
    %v2431 = vadd.f32 %v2429, %v2430
    %v2432 = vsel %vm2071, %v2047, 0.0
    %v2433 = vadd.f32 %v2431, %v2432
    %v2434 = vsel %vm2071, %v2048, 0.0
    %v2435 = vadd.f32 %v2433, %v2434
    %v2436 = vsel %vm2071, %v2049, 0.0
    %v2437 = vadd.f32 %v2435, %v2436
    %v2438 = vsel %vm2071, %v2050, 0.0
    %v2439 = vadd.f32 %v2437, %v2438
    %v2440 = vsel %vm2071, %v2051, 0.0
    %v2441 = vadd.f32 %v2439, %v2440
    %v2442 = vsel %vm2071, %v2052, 0.0
    %v2443 = vadd.f32 %v2441, %v2442
    %v2444 = vsel %vm2071, %v2053, 0.0
    %v2445 = vadd.f32 %v2443, %v2444
    %v2446 = vsel %vm2071, %v2054, 0.0
    %v2447 = vadd.f32 %v2445, %v2446
    %v2448 = vsel %vm2071, %v2055, 0.0
    %v2449 = vadd.f32 %v2447, %v2448
    %v2450 = vsel %vm2071, %v2056, 0.0
    %v2451 = vadd.f32 %v2449, %v2450
    %v2452 = vsel %vm2071, %v2057, 0.0
    %v2453 = vadd.f32 %v2451, %v2452
    %v2454 = vsel %vm2071, %v2058, 0.0
    %v2455 = vadd.f32 %v2453, %v2454
    %v2456 = vsel %vm2071, %v2059, 0.0
    %v2457 = vadd.f32 %v2455, %v2456
    %v2458 = vsel %vm2071, %v2060, 0.0
    %v2459 = vadd.f32 %v2457, %v2458
    %v2460 = vsel %vm2071, %v2061, 0.0
    %v2461 = vadd.f32 %v2459, %v2460
    %v2462 = vsel %vm2071, %v2062, 0.0
    %v2463 = vadd.f32 %v2461, %v2462
    %v2464 = vsel %vm2071, %v2063, 0.0
    %v2465 = vadd.f32 %v2463, %v2464
    %v2466 = vsel %vm2071, %v2064, 0.0
    %v2467 = vadd.f32 %v2465, %v2466
    %v2468 = vsel %vm2071, %v2065, 0.0
    %v2469 = vadd.f32 %v2467, %v2468
    %v2470 = vsel %vm2071, %v2066, 0.0
    %v2471 = vadd.f32 %v2469, %v2470
    %v2472 = vsel %vm2071, %v2067, 0.0
    %v2473 = vadd.f32 %v2471, %v2472
    %v2474 = vsel %vm2071, %v2068, 0.0
    %v2475 = vadd.f32 %v2473, %v2474
    %v2476 = vsel %vm2071, %v2069, 0.0
    %v2477 = vadd.f32 %v2475, %v2476
    %v2478 = vsel %vm2071, %v2070, 0.0
    %v2479 = vadd.f32 %v2477, %v2478
    %v2480 = vrot.slane %v2479, 4
    %v2481 = vadd.f32 %v2479, %v2480
    %v2482 = vrot.slane %v2481, 2
    %v2483 = vadd.f32 %v2481, %v2482
    %v2484 = vrot.slane %v2483, 1
    %v2485 = vadd.f32 %v2483, %v2484
    %v2486 = vmul.f32 %v2140, 0.00390625
    %v2487 = vmul.f32 %v2209, 0.00390625
    %v2488 = vmul.f32 %v2278, 0.00390625
    %v2489 = vmul.f32 %v2347, 0.00390625
    %v2490 = vmul.f32 %v2416, 0.00390625
    %v2491 = vmul.f32 %v2485, 0.00390625
    %v2492 = vpack.c.bf16 %v2486, %v2486
    %v2493 = vpack.c.bf16 %v2487, %v2487
    %v2494 = vpack.c.bf16 %v2488, %v2488
    %v2495 = vpack.c.bf16 %v2489, %v2489
    %v2496 = vpack.c.bf16 %v2490, %v2490
    %v2497 = vpack.c.bf16 %v2491, %v2491
    %v2498 = vld [vmem:[#allocation8] sm:$0xf]
    %v2499 = vld [vmem:[#allocation8 + $0x4] sm:$0xf]
    %v2500 = vld [vmem:[#allocation8 + $0x8] sm:$0xf]
    %v2501 = vld [vmem:[#allocation8 + $0xc] sm:$0xf]
    %v2502 = vld [vmem:[#allocation10] sm:$0x1]
    %v2504 = vlaneseq
    %v2505 = vshrl.u32 %v2504, 7
    %v2506 = vsub.s32 0, %v2505
    %v2507 = vrot.slane %v2502, %v2506
    %v2515 = vunpack.c.l.b16 %v2492
    %v2516 = vunpack.c.l.b16 %v2493
    %v2517 = vunpack.c.l.b16 %v2494
    %v2518 = vunpack.c.l.b16 %v2495
    %v2519 = vunpack.c.l.b16 %v2496
    %v2520 = vunpack.c.l.b16 %v2497
    %vm2521 = vcmask 1041409
    %v2522 = vsel %vm2521, %v2516, %v2515
    %vm2523 = vcmask 1042434
    %v2524 = vsel %vm2523, %v2517, %v2522
    %vm2525 = vcmask 1043459
    %v2526 = vsel %vm2525, %v2518, %v2524
    %vm2527 = vcmask 1044484
    %v2528 = vsel %vm2527, %v2519, %v2526
    %vm2529 = vcmask 1045509
    %v2530 = vsel %vm2529, %v2520, %v2528
    %v2531 = vpack.c.b16 %v2530, %v2530
    %v2536 = vunpack.c.l.b16 %v2498
    %v2537 = vunpack.c.l.b16 %v2499
    %v2538 = vunpack.c.l.b16 %v2500
    %v2539 = vunpack.c.l.b16 %v2501
    %v2540 = vpack.c.b16 %v2537, %v2536
    %v2541 = vpack.c.b16 %v2539, %v2538
    %v2545 = vsel %vm2071, %v2531, 0
    %2547 = vmatprep.subr.bf16.mxu0 0
    %2548 = vmatpush1.bf16.msra.mxu0 %v2540
    %2549 = vmatprep.subr.bf16.mxu0 0
    %2550 = vmatpush1.bf16.msra.mxu0 %v2541
    %2551 = vmatprep.subr.bf16.mxu0 0
    %2552 = vmatpush1.bf16.msra.mxu0 0
    %2553 = vmatprep.subr.bf16.mxu0 0
    %2554 = vmatpush1.bf16.msra.mxu0 0
    %2555 = vmatprep.subr.bf16.mxu0 0
    %2556 = vmatpush1.bf16.msra.mxu0 0
    %2557 = vmatprep.subr.bf16.mxu0 0
    %2558 = vmatpush1.bf16.msra.mxu0 0
    %2559 = vmatprep.subr.bf16.mxu0 0
    %2560 = vmatpush1.bf16.msra.mxu0 0
    %2561 = vmatprep.subr.bf16.mxu0 0
    %2562 = vmatpush1.bf16.msra.mxu0 0
    %2563 = vmatprep.subr.bf16.mxu0 0
    %2564 = vmatpush1.bf16.msra.mxu0 0
    %2565 = vmatprep.subr.bf16.mxu0 0
    %2566 = vmatpush1.bf16.msra.mxu0 0
    %2567 = vmatprep.subr.bf16.mxu0 0
    %2568 = vmatpush1.bf16.msra.mxu0 0
    %2569 = vmatprep.subr.bf16.mxu0 0
    %2570 = vmatpush1.bf16.msra.mxu0 0
    %2571 = vmatprep.subr.bf16.mxu0 0
    %2572 = vmatpush1.bf16.msra.mxu0 0
    %2573 = vmatprep.subr.bf16.mxu0 0
    %2574 = vmatpush1.bf16.msra.mxu0 0
    %2575 = vmatprep.subr.bf16.mxu0 0
    %2576 = vmatpush1.bf16.msra.mxu0 0
    %2577 = vmatprep.subr.bf16.mxu0 0
    %2578 = vmatpush1.bf16.msra.mxu0 0
    %2579 = vmatprep.mubr.bf16.mxu0 0
    %2580 = vmatmul.mubr.bf16.gmra.mrb[0].mxu0 %v2545
    %v2581 = vpop.f32.mrb[0].mxu0
    %v2582 = vadd.f32 %v2507, %v2581
    %v2583 = vpop.f32.mrb[0].mxu0
    %v2584 = vpop.f32.mrb[0].mxu0
    %v2585 = vpop.f32.mrb[0].mxu0
    %2586 = vdwg.mxu0
    %2587 = vst [vmem:[#allocation11] sm:$0x3f] %v2582
    // Predicated region
    $region42: #{tpu_custom_call.1} parent=1 // pred_check
      _
    $region43: #{tpu_custom_call.1} parent=1 // pred_check_branch
      %2589 = sbr.rel (0) target = $region45
    $region44: #{tpu_custom_call.1} parent=1 // pred_region
      %s2591 = ssub.s32 128, 128
      %2592 = vsyncadd [#allocation4], %s2591
      %s2594 = sshll.u32 [#allocation11], 4
      %s2595 = int_to_ptr.vmem [resolvable:$true] %s2594
      %2597 = dma.vmem_to_hbm [thread:$0]  %s2595, 128, %s5, [#allocation4]
    $region45: #{tpu_custom_call.1} parent=1 // pred_fallthru
      _
    // Predicated region
    $region46: #{tpu_custom_call.1} parent=1 // pred_check
      _
    $region47: #{tpu_custom_call.1} parent=1 // pred_check_branch
      %2599 = sbr.rel (0) target = $region49
    $region48: #{tpu_custom_call.1} parent=1 // pred_region
      %2600 = dma.done [#allocation4], 128
    $region49: #{tpu_custom_call.1} parent=1 // pred_fallthru
      _
    %2601 = vsyncpa [#allocation3], 1
    %2602 = vsyncpa [#allocation6], 1
    %2603 = vsyncpa [#allocation9], 1
    %2604 = vsyncpa [#allocation4], 1

</llo_original>
